<compile_context>
chip_gen: v7x
topology: tpu7x:2x2x1
jax: 0.10.0
libtpu: 0.0.40
codegen_flags: <defaults>
</compile_context>

<pallas_src>
import jax
import jax.numpy as jnp
from jax import lax
from jax.experimental import pallas as pl
from jax.experimental.pallas import tpu as pltpu

# ---- small, forward-consistent shapes ----
S, B = 8, 2            # seq_len, batch
VOCAB = 50             # input_dim (vocab size)
VOCAB_PAD = 64         # vocab rows padded for the in-kernel gather
E = 32                 # embedding_dim
H = 32                 # hidden_dim
O = 4                  # output_dim
A = 100                # attention hidden dim (nn.Linear default hidden_dim=100)
BP = 8                 # batch padded to the f32 sublane granularity
LANES = 128            # lane width: 3*H=96, A=100, O=4 all zero-padded to 128

# ---- static row offsets inside the packed [R, 128] f32 parameter slab ----
R_WI = 0                 # [E, 128]   fused input-gate weights  [W_ir|W_iz|W_in]
R_WH = R_WI + E          # [H, 128]   fused hidden-gate weights [W_hr|W_hz|W_hn]
R_W1 = R_WH + H          # [H, 128]   attention w1
R_W2 = R_W1 + H          # [H, 128]   attention w2
R_FCW = R_W2 + H         # [H, 128]   final fc weight (O cols, zero-padded)
R_V = R_FCW + H          # [128, 128] attention v stored as a column in lane 0
R_BIAS = R_V + LANES     # [8, 128]   rows: 0=bi, 1=bh, 2=b2, 3=fcb, 4..7=zero
R_TOT = R_BIAS + 8       # 296 rows total


def rnn_att_kernel(text_ref,   # SMEM [S, B]            int32 token ids
                   emb_ref,    # VMEM [VOCAB_PAD, E]    f32 embedding table
                   slab_ref,   # VMEM [R_TOT, 128]      f32 packed parameters
                   out_ref):   # VMEM [BP, 128]         f32 lane-dense output
    f32, bf16 = jnp.float32, jnp.bfloat16

    # ---- static slab slices (8-row aligned); matmul weights cast once to bf16 ----
    wi = slab_ref[R_WI:R_WI + E, :].astype(bf16)        # [E, 128]
    wh = slab_ref[R_WH:R_WH + H, :].astype(bf16)        # [H, 128]
    w1 = slab_ref[R_W1:R_W1 + H, :].astype(bf16)        # [H, 128]
    w2 = slab_ref[R_W2:R_W2 + H, :].astype(bf16)        # [H, 128]
    fcw = slab_ref[R_FCW:R_FCW + H, :]                  # [H, 128] f32 (tiny, post-loop)
    v_col = slab_ref[R_V:R_V + LANES, 0:1]              # [128, 1] f32
    biases = slab_ref[R_BIAS:R_BIAS + 8, :]             # one aligned [8, 128] load
    bi = biases[0:1, :]
    bh = biases[1:2, :]
    b2 = biases[2:3, :]
    fcb = biases[3:4, :]

    # ---- in-kernel embedding gather into a batch-padded, s-major [S*BP, E] slab ----
    zpad = jnp.zeros((BP - B, E), f32)
    rows = []
    for t in range(S):
        for b in range(B):
            rows.append(emb_ref[pl.ds(text_ref[t, b], 1), :])   # [1, E] dynamic row
        rows.append(zpad)
    x = jnp.concatenate(rows, axis=0)                            # [S*BP, E]

    # ---- hoisted x-side gate pre-activations: one bf16 MXU matmul for all steps ----
    x_gates = jnp.dot(x.astype(bf16), wi,
                      preferred_element_type=f32) + bi           # [S*BP, 128]

    # ---- GRU recurrence, fully unrolled; bf16 MXU operands, f32 accumulation,
    #      all elementwise gate math in f32 (VPU/EUP) ----
    h = jnp.zeros((BP, H), f32)
    hs = []
    for t in range(S):
        hg = jnp.dot(h.astype(bf16), wh,
                     preferred_element_type=f32) + bh            # [BP, 128]
        xg = x_gates[t * BP:(t + 1) * BP, :]                     # aligned static slice
        pre = xg + hg
        rz = jax.nn.sigmoid(pre[:, 0:2 * H])                     # one EUP push for r,z
        r = rz[:, 0:H]
        z = rz[:, H:2 * H]
        n = jnp.tanh(xg[:, 2 * H:3 * H] + r * hg[:, 2 * H:3 * H])
        h = (1.0 - z) * n + z * h                                # [BP, H]
        hs.append(h)

    outs = jnp.concatenate(hs, axis=0)                           # [S*BP, H] aligned blocks

    # ---- additive attention; projections on the MXU (bf16 operands, f32 acc) ----
    w1h = jnp.dot(outs.astype(bf16), w1, preferred_element_type=f32)      # [S*BP, 128]
    w2h = jnp.dot(h.astype(bf16), w2, preferred_element_type=f32) + b2    # [BP, 128]
    u = jnp.tanh(w1h + jnp.concatenate([w2h] * S, axis=0))                # [S*BP, 128]
    # V projection (MXU).  V-bias omitted: a per-row constant shift cancels in softmax.
    score = jnp.dot(u, v_col, preferred_element_type=f32)                 # [S*BP, 1]

    # regroup to lane-dense [BP, S]; with BP=8 the sublane slices are aligned (free)
    score_bs = jnp.concatenate(
        [score[t * BP:(t + 1) * BP, :] for t in range(S)], axis=1)        # [BP, S]
    m = jnp.max(score_bs, axis=1, keepdims=True)
    e = jnp.exp(score_bs - m)
    att = e * pl.reciprocal(jnp.sum(e, axis=1, keepdims=True), approx=True)

    # context = sum_t att[:, t] * h_t
    ctx = jnp.zeros((BP, H), f32)
    for t in range(S):
        ctx = ctx + att[:, t:t + 1] * hs[t]                               # [BP, H]

    # ---- final fc into a lane-dense [BP, 128] output tile ----
    out_ref[...] = jnp.dot(ctx, fcw, preferred_element_type=f32) + fcb


def init_params(key):
    keys = jax.random.split(key, 15)

    def rnd(k, shape, scale=0.2):
        return scale * jax.random.normal(k, shape, dtype=jnp.float32)

    p = {}
    p['emb_table'] = rnd(keys[0], (VOCAB, E), 1.0)
    p['wir'] = rnd(keys[1], (E, H))
    p['wiz'] = rnd(keys[2], (E, H))
    p['win'] = rnd(keys[3], (E, H))
    p['whr'] = rnd(keys[4], (H, H))
    p['whz'] = rnd(keys[5], (H, H))
    p['whn'] = rnd(keys[6], (H, H))
    p['bias'] = rnd(keys[7], (6, H))          # b_ir, b_iz, b_in, b_hr, b_hz, b_hn
    p['w1'] = rnd(keys[8], (H, A))
    p['w2'] = rnd(keys[9], (H, A))
    p['b2'] = rnd(keys[10], (1, A))
    p['v'] = rnd(keys[11], (1, A))
    p['bv'] = rnd(keys[12], (1, 1))
    p['fcw'] = rnd(keys[13], (H, O))
    p['fcb'] = rnd(keys[14], (1, O))
    return p


def fuse_params(p):
    """Pack everything into one lane-dense [R_TOT, 128] f32 slab + padded emb table."""
    def padlanes(m):
        return jnp.pad(m, ((0, 0), (0, LANES - m.shape[1])))

    wi = jnp.concatenate([p['wir'], p['wiz'], p['win']], axis=1)          # [E, 3H]
    wh = jnp.concatenate([p['whr'], p['whz'], p['whn']], axis=1)          # [H, 3H]
    bi = p['bias'][0:3].reshape(1, 3 * H)                                 # [1, 3H]
    bh = p['bias'][3:6].reshape(1, 3 * H)                                 # [1, 3H]
    v_col = jnp.zeros((LANES, LANES), jnp.float32).at[:A, 0].set(p['v'][0])
    bias_block = jnp.concatenate(
        [padlanes(bi), padlanes(bh), padlanes(p['b2']), padlanes(p['fcb']),
         jnp.zeros((4, LANES), jnp.float32)], axis=0)                     # [8, 128]

    slab = jnp.concatenate([
        padlanes(wi),          # R_WI
        padlanes(wh),          # R_WH
        padlanes(p['w1']),     # R_W1
        padlanes(p['w2']),     # R_W2
        padlanes(p['fcw']),    # R_FCW
        v_col,                 # R_V   (v in lane 0; V-bias dropped, cancels in softmax)
        bias_block,            # R_BIAS
    ], axis=0)
    assert slab.shape == (R_TOT, LANES), slab.shape

    emb_pad = jnp.pad(p['emb_table'], ((0, VOCAB_PAD - VOCAB), (0, 0)))   # [64, E]
    return emb_pad, slab


@jax.jit
def rnn_forward(text, emb_pad, slab):
    vmem = pl.BlockSpec(memory_space=pltpu.MemorySpace.VMEM)
    smem = pl.BlockSpec(memory_space=pltpu.MemorySpace.SMEM)
    out = pl.pallas_call(
        rnn_att_kernel,
        out_shape=jax.ShapeDtypeStruct((BP, LANES), jnp.float32),
        in_specs=[smem, vmem, vmem],
        out_specs=vmem,
    )(text, emb_pad, slab)
    # matches torch: pred = self.fc(att_context).view(-1, 1)  -> [B*O, 1]
    return out[:B, :O].reshape(-1, 1)


def rnn_forward_ref(text, p):
    # pure-JAX f32 reference with the exact module semantics (unfused params)
    embedded = p['emb_table'][text]                                       # [S, B, E]

    def step(h, x_t):
        r = jax.nn.sigmoid(x_t @ p['wir'] + p['bias'][0] + h @ p['whr'] + p['bias'][3])
        z = jax.nn.sigmoid(x_t @ p['wiz'] + p['bias'][1] + h @ p['whz'] + p['bias'][4])
        n = jnp.tanh(x_t @ p['win'] + p['bias'][2] + r * (h @ p['whn'] + p['bias'][5]))
        h_new = (1.0 - z) * n + z * h
        return h_new, h_new

    h0 = jnp.zeros((B, H), jnp.float32)
    h_last, outs = lax.scan(step, h0, embedded)                           # outs [S, B, H]
    w1h = outs @ p['w1']                                                  # [S, B, A]
    w2h = h_last @ p['w2'] + p['b2']                                      # [B, A]
    u = jnp.tanh(w1h + w2h[None])
    score = jnp.sum(u * p['v'], axis=-1) + p['bv'][0, 0]                  # [S, B]
    att = jax.nn.softmax(score, axis=0)
    ctx = jnp.sum(att[:, :, None] * outs, axis=0)                         # [B, H]
    pred = ctx @ p['fcw'] + p['fcb']
    return pred.reshape(-1, 1)


if __name__ == "__main__":
    key = jax.random.PRNGKey(0)
    kp, kt = jax.random.split(key)
    params = init_params(kp)
    emb_pad, slab = fuse_params(params)
    text = jax.random.randint(kt, (S, B), 0, VOCAB, dtype=jnp.int32)      # [seq, batch]

    out = jax.block_until_ready(rnn_forward(text, emb_pad, slab))
    ref = rnn_forward_ref(text, params)

    assert out.shape == (B * O, 1), out.shape
    # Tolerance reflects bf16 MXU operands (f32 accumulation) through the 8-step
    # recurrence plus the approximate reciprocal in the softmax, compared against
    # a pure-f32 reference; typical error is O(1e-2) at these value scales.
    assert jnp.allclose(out, ref, atol=5e-2, rtol=5e-2), \
        float(jnp.max(jnp.abs(out - ref)))
    print("KERNEL_OK")
</pallas_src>

<mosaic_0001>
module attributes {stable_mosaic.version = 11 : i64} {
  func.func @rnn_att_kernel(%arg0: memref<8x2xi32, #tpu.memory_space<smem>>, %arg1: memref<64x32xf32, #tpu.memory_space<vmem>>, %arg2: memref<296x128xf32, #tpu.memory_space<vmem>>, %arg3: memref<8x128xf32, #tpu.memory_space<vmem>>) attributes {dimension_semantics = [], scalar_prefetch = 0 : i64, scratch_operands = 0 : i64, tpu.core_type = #tpu.core_type<tc>} {
    %c0 = arith.constant 0 : index
    %c0_0 = arith.constant 0 : index
    %0 = vector.load %arg2[%c0, %c0_0] : memref<296x128xf32, #tpu.memory_space<vmem>>, vector<32x128xf32>
    %1 = arith.truncf %0 : vector<32x128xf32> to vector<32x128xbf16>
    %c32 = arith.constant 32 : index
    %c0_1 = arith.constant 0 : index
    %2 = vector.load %arg2[%c32, %c0_1] : memref<296x128xf32, #tpu.memory_space<vmem>>, vector<32x128xf32>
    %3 = arith.truncf %2 : vector<32x128xf32> to vector<32x128xbf16>
    %c64 = arith.constant 64 : index
    %c0_2 = arith.constant 0 : index
    %4 = vector.load %arg2[%c64, %c0_2] : memref<296x128xf32, #tpu.memory_space<vmem>>, vector<32x128xf32>
    %5 = arith.truncf %4 : vector<32x128xf32> to vector<32x128xbf16>
    %c96 = arith.constant 96 : index
    %c0_3 = arith.constant 0 : index
    %6 = vector.load %arg2[%c96, %c0_3] : memref<296x128xf32, #tpu.memory_space<vmem>>, vector<32x128xf32>
    %7 = arith.truncf %6 : vector<32x128xf32> to vector<32x128xbf16>
    %c128 = arith.constant 128 : index
    %c0_4 = arith.constant 0 : index
    %8 = vector.load %arg2[%c128, %c0_4] : memref<296x128xf32, #tpu.memory_space<vmem>>, vector<32x128xf32>
    %c160 = arith.constant 160 : index
    %c0_5 = arith.constant 0 : index
    %9 = vector.load %arg2[%c160, %c0_5] : memref<296x128xf32, #tpu.memory_space<vmem>>, vector<128x1xf32>
    %c288 = arith.constant 288 : index
    %c0_6 = arith.constant 0 : index
    %10 = vector.load %arg2[%c288, %c0_6] : memref<296x128xf32, #tpu.memory_space<vmem>>, vector<8x128xf32>
    %11 = vector.extract_strided_slice %10 {offsets = [0, 0], sizes = [1, 128], strides = [1, 1]} : vector<8x128xf32> to vector<1x128xf32>
    %12 = vector.extract_strided_slice %10 {offsets = [1, 0], sizes = [1, 128], strides = [1, 1]} : vector<8x128xf32> to vector<1x128xf32>
    %13 = vector.extract_strided_slice %10 {offsets = [2, 0], sizes = [1, 128], strides = [1, 1]} : vector<8x128xf32> to vector<1x128xf32>
    %14 = vector.extract_strided_slice %10 {offsets = [3, 0], sizes = [1, 128], strides = [1, 1]} : vector<8x128xf32> to vector<1x128xf32>
    %cst = arith.constant 0.000000e+00 : f32
    %15 = vector.broadcast %cst : f32 to vector<6x32xf32>
    %c0_7 = arith.constant 0 : index
    %c0_8 = arith.constant 0 : index
    %16 = memref.load %arg0[%c0_7, %c0_8] : memref<8x2xi32, #tpu.memory_space<smem>>
    %17 = arith.index_cast %16 : i32 to index
    %c0_9 = arith.constant 0 : index
    %18 = vector.load %arg1[%17, %c0_9] : memref<64x32xf32, #tpu.memory_space<vmem>>, vector<1x32xf32>
    %c0_10 = arith.constant 0 : index
    %c1 = arith.constant 1 : index
    %19 = memref.load %arg0[%c0_10, %c1] : memref<8x2xi32, #tpu.memory_space<smem>>
    %20 = arith.index_cast %19 : i32 to index
    %c0_11 = arith.constant 0 : index
    %21 = vector.load %arg1[%20, %c0_11] : memref<64x32xf32, #tpu.memory_space<vmem>>, vector<1x32xf32>
    %c1_12 = arith.constant 1 : index
    %c0_13 = arith.constant 0 : index
    %22 = memref.load %arg0[%c1_12, %c0_13] : memref<8x2xi32, #tpu.memory_space<smem>>
    %23 = arith.index_cast %22 : i32 to index
    %c0_14 = arith.constant 0 : index
    %24 = vector.load %arg1[%23, %c0_14] : memref<64x32xf32, #tpu.memory_space<vmem>>, vector<1x32xf32>
    %c1_15 = arith.constant 1 : index
    %c1_16 = arith.constant 1 : index
    %25 = memref.load %arg0[%c1_15, %c1_16] : memref<8x2xi32, #tpu.memory_space<smem>>
    %26 = arith.index_cast %25 : i32 to index
    %c0_17 = arith.constant 0 : index
    %27 = vector.load %arg1[%26, %c0_17] : memref<64x32xf32, #tpu.memory_space<vmem>>, vector<1x32xf32>
    %c2 = arith.constant 2 : index
    %c0_18 = arith.constant 0 : index
    %28 = memref.load %arg0[%c2, %c0_18] : memref<8x2xi32, #tpu.memory_space<smem>>
    %29 = arith.index_cast %28 : i32 to index
    %c0_19 = arith.constant 0 : index
    %30 = vector.load %arg1[%29, %c0_19] : memref<64x32xf32, #tpu.memory_space<vmem>>, vector<1x32xf32>
    %c2_20 = arith.constant 2 : index
    %c1_21 = arith.constant 1 : index
    %31 = memref.load %arg0[%c2_20, %c1_21] : memref<8x2xi32, #tpu.memory_space<smem>>
    %32 = arith.index_cast %31 : i32 to index
    %c0_22 = arith.constant 0 : index
    %33 = vector.load %arg1[%32, %c0_22] : memref<64x32xf32, #tpu.memory_space<vmem>>, vector<1x32xf32>
    %c3 = arith.constant 3 : index
    %c0_23 = arith.constant 0 : index
    %34 = memref.load %arg0[%c3, %c0_23] : memref<8x2xi32, #tpu.memory_space<smem>>
    %35 = arith.index_cast %34 : i32 to index
    %c0_24 = arith.constant 0 : index
    %36 = vector.load %arg1[%35, %c0_24] : memref<64x32xf32, #tpu.memory_space<vmem>>, vector<1x32xf32>
    %c3_25 = arith.constant 3 : index
    %c1_26 = arith.constant 1 : index
    %37 = memref.load %arg0[%c3_25, %c1_26] : memref<8x2xi32, #tpu.memory_space<smem>>
    %38 = arith.index_cast %37 : i32 to index
    %c0_27 = arith.constant 0 : index
    %39 = vector.load %arg1[%38, %c0_27] : memref<64x32xf32, #tpu.memory_space<vmem>>, vector<1x32xf32>
    %c4 = arith.constant 4 : index
    %c0_28 = arith.constant 0 : index
    %40 = memref.load %arg0[%c4, %c0_28] : memref<8x2xi32, #tpu.memory_space<smem>>
    %41 = arith.index_cast %40 : i32 to index
    %c0_29 = arith.constant 0 : index
    %42 = vector.load %arg1[%41, %c0_29] : memref<64x32xf32, #tpu.memory_space<vmem>>, vector<1x32xf32>
    %c4_30 = arith.constant 4 : index
    %c1_31 = arith.constant 1 : index
    %43 = memref.load %arg0[%c4_30, %c1_31] : memref<8x2xi32, #tpu.memory_space<smem>>
    %44 = arith.index_cast %43 : i32 to index
    %c0_32 = arith.constant 0 : index
    %45 = vector.load %arg1[%44, %c0_32] : memref<64x32xf32, #tpu.memory_space<vmem>>, vector<1x32xf32>
    %c5 = arith.constant 5 : index
    %c0_33 = arith.constant 0 : index
    %46 = memref.load %arg0[%c5, %c0_33] : memref<8x2xi32, #tpu.memory_space<smem>>
    %47 = arith.index_cast %46 : i32 to index
    %c0_34 = arith.constant 0 : index
    %48 = vector.load %arg1[%47, %c0_34] : memref<64x32xf32, #tpu.memory_space<vmem>>, vector<1x32xf32>
    %c5_35 = arith.constant 5 : index
    %c1_36 = arith.constant 1 : index
    %49 = memref.load %arg0[%c5_35, %c1_36] : memref<8x2xi32, #tpu.memory_space<smem>>
    %50 = arith.index_cast %49 : i32 to index
    %c0_37 = arith.constant 0 : index
    %51 = vector.load %arg1[%50, %c0_37] : memref<64x32xf32, #tpu.memory_space<vmem>>, vector<1x32xf32>
    %c6 = arith.constant 6 : index
    %c0_38 = arith.constant 0 : index
    %52 = memref.load %arg0[%c6, %c0_38] : memref<8x2xi32, #tpu.memory_space<smem>>
    %53 = arith.index_cast %52 : i32 to index
    %c0_39 = arith.constant 0 : index
    %54 = vector.load %arg1[%53, %c0_39] : memref<64x32xf32, #tpu.memory_space<vmem>>, vector<1x32xf32>
    %c6_40 = arith.constant 6 : index
    %c1_41 = arith.constant 1 : index
    %55 = memref.load %arg0[%c6_40, %c1_41] : memref<8x2xi32, #tpu.memory_space<smem>>
    %56 = arith.index_cast %55 : i32 to index
    %c0_42 = arith.constant 0 : index
    %57 = vector.load %arg1[%56, %c0_42] : memref<64x32xf32, #tpu.memory_space<vmem>>, vector<1x32xf32>
    %c7 = arith.constant 7 : index
    %c0_43 = arith.constant 0 : index
    %58 = memref.load %arg0[%c7, %c0_43] : memref<8x2xi32, #tpu.memory_space<smem>>
    %59 = arith.index_cast %58 : i32 to index
    %c0_44 = arith.constant 0 : index
    %60 = vector.load %arg1[%59, %c0_44] : memref<64x32xf32, #tpu.memory_space<vmem>>, vector<1x32xf32>
    %c7_45 = arith.constant 7 : index
    %c1_46 = arith.constant 1 : index
    %61 = memref.load %arg0[%c7_45, %c1_46] : memref<8x2xi32, #tpu.memory_space<smem>>
    %62 = arith.index_cast %61 : i32 to index
    %c0_47 = arith.constant 0 : index
    %63 = vector.load %arg1[%62, %c0_47] : memref<64x32xf32, #tpu.memory_space<vmem>>, vector<1x32xf32>
    %64 = tpu.concatenate %18, %21, %15, %24, %27, %15, %30, %33, %15, %36, %39, %15, %42, %45, %15, %48 in 0 : vector<1x32xf32>, vector<1x32xf32>, vector<6x32xf32>, vector<1x32xf32>, vector<1x32xf32>, vector<6x32xf32>, vector<1x32xf32>, vector<1x32xf32>, vector<6x32xf32>, vector<1x32xf32>, vector<1x32xf32>, vector<6x32xf32>, vector<1x32xf32>, vector<1x32xf32>, vector<6x32xf32>, vector<1x32xf32> -> vector<41x32xf32>
    %65 = tpu.concatenate %51, %15, %54, %57, %15, %60, %63, %15 in 0 : vector<1x32xf32>, vector<6x32xf32>, vector<1x32xf32>, vector<1x32xf32>, vector<6x32xf32>, vector<1x32xf32>, vector<1x32xf32>, vector<6x32xf32> -> vector<23x32xf32>
    %66 = tpu.concatenate %64, %65 in 0 : vector<41x32xf32>, vector<23x32xf32> -> vector<64x32xf32>
    %67 = arith.truncf %66 : vector<64x32xf32> to vector<64x32xbf16>
    %cst_48 = arith.constant dense<0.000000e+00> : vector<64x128xf32>
    %68 = tpu.matmul %67, %1, %cst_48 {dimension_numbers = #tpu.dot_dimension_numbers<[1], [0], [0], [1], [0, 0, 1, 1], [], []>} : vector<64x32xbf16>, vector<32x128xbf16>, vector<64x128xf32> -> vector<64x128xf32>
    %69 = vector.broadcast %11 : vector<1x128xf32> to vector<64x128xf32>
    %70 = arith.addf %68, %69 : vector<64x128xf32>
    %cst_49 = arith.constant 0.000000e+00 : f32
    %71 = vector.broadcast %cst_49 : f32 to vector<8x32xf32>
    %72 = arith.truncf %71 : vector<8x32xf32> to vector<8x32xbf16>
    %cst_50 = arith.constant dense<0.000000e+00> : vector<8x128xf32>
    %73 = tpu.matmul %72, %3, %cst_50 {dimension_numbers = #tpu.dot_dimension_numbers<[1], [0], [0], [1], [0, 0, 1, 1], [], []>} : vector<8x32xbf16>, vector<32x128xbf16>, vector<8x128xf32> -> vector<8x128xf32>
    %74 = vector.broadcast %12 : vector<1x128xf32> to vector<8x128xf32>
    %75 = arith.addf %73, %74 : vector<8x128xf32>
    %76 = vector.extract_strided_slice %70 {offsets = [0, 0], sizes = [8, 128], strides = [1, 1]} : vector<64x128xf32> to vector<8x128xf32>
    %77 = arith.addf %76, %75 : vector<8x128xf32>
    %78 = vector.extract_strided_slice %77 {offsets = [0, 0], sizes = [8, 64], strides = [1, 1]} : vector<8x128xf32> to vector<8x64xf32>
    %79 = arith.negf %78 : vector<8x64xf32>
    %80 = math.exp %79 : vector<8x64xf32>
    %cst_51 = arith.constant 1.000000e+00 : f32
    %81 = vector.broadcast %cst_51 : f32 to vector<8x64xf32>
    %82 = arith.addf %81, %80 : vector<8x64xf32>
    %83 = arith.divf %81, %82 : vector<8x64xf32>
    %84 = vector.extract_strided_slice %83 {offsets = [0, 0], sizes = [8, 32], strides = [1, 1]} : vector<8x64xf32> to vector<8x32xf32>
    %85 = vector.extract_strided_slice %83 {offsets = [0, 32], sizes = [8, 32], strides = [1, 1]} : vector<8x64xf32> to vector<8x32xf32>
    %86 = vector.extract_strided_slice %76 {offsets = [0, 64], sizes = [8, 32], strides = [1, 1]} : vector<8x128xf32> to vector<8x32xf32>
    %87 = vector.extract_strided_slice %75 {offsets = [0, 64], sizes = [8, 32], strides = [1, 1]} : vector<8x128xf32> to vector<8x32xf32>
    %88 = arith.mulf %84, %87 : vector<8x32xf32>
    %89 = arith.addf %86, %88 : vector<8x32xf32>
    %90 = math.tanh %89 : vector<8x32xf32>
    %cst_52 = arith.constant 1.000000e+00 : f32
    %91 = vector.broadcast %cst_52 : f32 to vector<8x32xf32>
    %92 = arith.subf %91, %85 : vector<8x32xf32>
    %93 = arith.mulf %92, %90 : vector<8x32xf32>
    %94 = arith.mulf %85, %71 : vector<8x32xf32>
    %95 = arith.addf %93, %94 : vector<8x32xf32>
    %96 = arith.truncf %95 : vector<8x32xf32> to vector<8x32xbf16>
    %cst_53 = arith.constant dense<0.000000e+00> : vector<8x128xf32>
    %97 = tpu.matmul %96, %3, %cst_53 {dimension_numbers = #tpu.dot_dimension_numbers<[1], [0], [0], [1], [0, 0, 1, 1], [], []>} : vector<8x32xbf16>, vector<32x128xbf16>, vector<8x128xf32> -> vector<8x128xf32>
    %98 = vector.broadcast %12 : vector<1x128xf32> to vector<8x128xf32>
    %99 = arith.addf %97, %98 : vector<8x128xf32>
    %100 = vector.extract_strided_slice %70 {offsets = [8, 0], sizes = [8, 128], strides = [1, 1]} : vector<64x128xf32> to vector<8x128xf32>
    %101 = arith.addf %100, %99 : vector<8x128xf32>
    %102 = vector.extract_strided_slice %101 {offsets = [0, 0], sizes = [8, 64], strides = [1, 1]} : vector<8x128xf32> to vector<8x64xf32>
    %103 = arith.negf %102 : vector<8x64xf32>
    %104 = math.exp %103 : vector<8x64xf32>
    %cst_54 = arith.constant 1.000000e+00 : f32
    %105 = vector.broadcast %cst_54 : f32 to vector<8x64xf32>
    %106 = arith.addf %105, %104 : vector<8x64xf32>
    %107 = arith.divf %105, %106 : vector<8x64xf32>
    %108 = vector.extract_strided_slice %107 {offsets = [0, 0], sizes = [8, 32], strides = [1, 1]} : vector<8x64xf32> to vector<8x32xf32>
    %109 = vector.extract_strided_slice %107 {offsets = [0, 32], sizes = [8, 32], strides = [1, 1]} : vector<8x64xf32> to vector<8x32xf32>
    %110 = vector.extract_strided_slice %100 {offsets = [0, 64], sizes = [8, 32], strides = [1, 1]} : vector<8x128xf32> to vector<8x32xf32>
    %111 = vector.extract_strided_slice %99 {offsets = [0, 64], sizes = [8, 32], strides = [1, 1]} : vector<8x128xf32> to vector<8x32xf32>
    %112 = arith.mulf %108, %111 : vector<8x32xf32>
    %113 = arith.addf %110, %112 : vector<8x32xf32>
    %114 = math.tanh %113 : vector<8x32xf32>
    %cst_55 = arith.constant 1.000000e+00 : f32
    %115 = vector.broadcast %cst_55 : f32 to vector<8x32xf32>
    %116 = arith.subf %115, %109 : vector<8x32xf32>
    %117 = arith.mulf %116, %114 : vector<8x32xf32>
    %118 = arith.mulf %109, %95 : vector<8x32xf32>
    %119 = arith.addf %117, %118 : vector<8x32xf32>
    %120 = arith.truncf %119 : vector<8x32xf32> to vector<8x32xbf16>
    %cst_56 = arith.constant dense<0.000000e+00> : vector<8x128xf32>
    %121 = tpu.matmul %120, %3, %cst_56 {dimension_numbers = #tpu.dot_dimension_numbers<[1], [0], [0], [1], [0, 0, 1, 1], [], []>} : vector<8x32xbf16>, vector<32x128xbf16>, vector<8x128xf32> -> vector<8x128xf32>
    %122 = vector.broadcast %12 : vector<1x128xf32> to vector<8x128xf32>
    %123 = arith.addf %121, %122 : vector<8x128xf32>
    %124 = vector.extract_strided_slice %70 {offsets = [16, 0], sizes = [8, 128], strides = [1, 1]} : vector<64x128xf32> to vector<8x128xf32>
    %125 = arith.addf %124, %123 : vector<8x128xf32>
    %126 = vector.extract_strided_slice %125 {offsets = [0, 0], sizes = [8, 64], strides = [1, 1]} : vector<8x128xf32> to vector<8x64xf32>
    %127 = arith.negf %126 : vector<8x64xf32>
    %128 = math.exp %127 : vector<8x64xf32>
    %cst_57 = arith.constant 1.000000e+00 : f32
    %129 = vector.broadcast %cst_57 : f32 to vector<8x64xf32>
    %130 = arith.addf %129, %128 : vector<8x64xf32>
    %131 = arith.divf %129, %130 : vector<8x64xf32>
    %132 = vector.extract_strided_slice %131 {offsets = [0, 0], sizes = [8, 32], strides = [1, 1]} : vector<8x64xf32> to vector<8x32xf32>
    %133 = vector.extract_strided_slice %131 {offsets = [0, 32], sizes = [8, 32], strides = [1, 1]} : vector<8x64xf32> to vector<8x32xf32>
    %134 = vector.extract_strided_slice %124 {offsets = [0, 64], sizes = [8, 32], strides = [1, 1]} : vector<8x128xf32> to vector<8x32xf32>
    %135 = vector.extract_strided_slice %123 {offsets = [0, 64], sizes = [8, 32], strides = [1, 1]} : vector<8x128xf32> to vector<8x32xf32>
    %136 = arith.mulf %132, %135 : vector<8x32xf32>
    %137 = arith.addf %134, %136 : vector<8x32xf32>
    %138 = math.tanh %137 : vector<8x32xf32>
    %cst_58 = arith.constant 1.000000e+00 : f32
    %139 = vector.broadcast %cst_58 : f32 to vector<8x32xf32>
    %140 = arith.subf %139, %133 : vector<8x32xf32>
    %141 = arith.mulf %140, %138 : vector<8x32xf32>
    %142 = arith.mulf %133, %119 : vector<8x32xf32>
    %143 = arith.addf %141, %142 : vector<8x32xf32>
    %144 = arith.truncf %143 : vector<8x32xf32> to vector<8x32xbf16>
    %cst_59 = arith.constant dense<0.000000e+00> : vector<8x128xf32>
    %145 = tpu.matmul %144, %3, %cst_59 {dimension_numbers = #tpu.dot_dimension_numbers<[1], [0], [0], [1], [0, 0, 1, 1], [], []>} : vector<8x32xbf16>, vector<32x128xbf16>, vector<8x128xf32> -> vector<8x128xf32>
    %146 = vector.broadcast %12 : vector<1x128xf32> to vector<8x128xf32>
    %147 = arith.addf %145, %146 : vector<8x128xf32>
    %148 = vector.extract_strided_slice %70 {offsets = [24, 0], sizes = [8, 128], strides = [1, 1]} : vector<64x128xf32> to vector<8x128xf32>
    %149 = arith.addf %148, %147 : vector<8x128xf32>
    %150 = vector.extract_strided_slice %149 {offsets = [0, 0], sizes = [8, 64], strides = [1, 1]} : vector<8x128xf32> to vector<8x64xf32>
    %151 = arith.negf %150 : vector<8x64xf32>
    %152 = math.exp %151 : vector<8x64xf32>
    %cst_60 = arith.constant 1.000000e+00 : f32
    %153 = vector.broadcast %cst_60 : f32 to vector<8x64xf32>
    %154 = arith.addf %153, %152 : vector<8x64xf32>
    %155 = arith.divf %153, %154 : vector<8x64xf32>
    %156 = vector.extract_strided_slice %155 {offsets = [0, 0], sizes = [8, 32], strides = [1, 1]} : vector<8x64xf32> to vector<8x32xf32>
    %157 = vector.extract_strided_slice %155 {offsets = [0, 32], sizes = [8, 32], strides = [1, 1]} : vector<8x64xf32> to vector<8x32xf32>
    %158 = vector.extract_strided_slice %148 {offsets = [0, 64], sizes = [8, 32], strides = [1, 1]} : vector<8x128xf32> to vector<8x32xf32>
    %159 = vector.extract_strided_slice %147 {offsets = [0, 64], sizes = [8, 32], strides = [1, 1]} : vector<8x128xf32> to vector<8x32xf32>
    %160 = arith.mulf %156, %159 : vector<8x32xf32>
    %161 = arith.addf %158, %160 : vector<8x32xf32>
    %162 = math.tanh %161 : vector<8x32xf32>
    %cst_61 = arith.constant 1.000000e+00 : f32
    %163 = vector.broadcast %cst_61 : f32 to vector<8x32xf32>
    %164 = arith.subf %163, %157 : vector<8x32xf32>
    %165 = arith.mulf %164, %162 : vector<8x32xf32>
    %166 = arith.mulf %157, %143 : vector<8x32xf32>
    %167 = arith.addf %165, %166 : vector<8x32xf32>
    %168 = arith.truncf %167 : vector<8x32xf32> to vector<8x32xbf16>
    %cst_62 = arith.constant dense<0.000000e+00> : vector<8x128xf32>
    %169 = tpu.matmul %168, %3, %cst_62 {dimension_numbers = #tpu.dot_dimension_numbers<[1], [0], [0], [1], [0, 0, 1, 1], [], []>} : vector<8x32xbf16>, vector<32x128xbf16>, vector<8x128xf32> -> vector<8x128xf32>
    %170 = vector.broadcast %12 : vector<1x128xf32> to vector<8x128xf32>
    %171 = arith.addf %169, %170 : vector<8x128xf32>
    %172 = vector.extract_strided_slice %70 {offsets = [32, 0], sizes = [8, 128], strides = [1, 1]} : vector<64x128xf32> to vector<8x128xf32>
    %173 = arith.addf %172, %171 : vector<8x128xf32>
    %174 = vector.extract_strided_slice %173 {offsets = [0, 0], sizes = [8, 64], strides = [1, 1]} : vector<8x128xf32> to vector<8x64xf32>
    %175 = arith.negf %174 : vector<8x64xf32>
    %176 = math.exp %175 : vector<8x64xf32>
    %cst_63 = arith.constant 1.000000e+00 : f32
    %177 = vector.broadcast %cst_63 : f32 to vector<8x64xf32>
    %178 = arith.addf %177, %176 : vector<8x64xf32>
    %179 = arith.divf %177, %178 : vector<8x64xf32>
    %180 = vector.extract_strided_slice %179 {offsets = [0, 0], sizes = [8, 32], strides = [1, 1]} : vector<8x64xf32> to vector<8x32xf32>
    %181 = vector.extract_strided_slice %179 {offsets = [0, 32], sizes = [8, 32], strides = [1, 1]} : vector<8x64xf32> to vector<8x32xf32>
    %182 = vector.extract_strided_slice %172 {offsets = [0, 64], sizes = [8, 32], strides = [1, 1]} : vector<8x128xf32> to vector<8x32xf32>
    %183 = vector.extract_strided_slice %171 {offsets = [0, 64], sizes = [8, 32], strides = [1, 1]} : vector<8x128xf32> to vector<8x32xf32>
    %184 = arith.mulf %180, %183 : vector<8x32xf32>
    %185 = arith.addf %182, %184 : vector<8x32xf32>
    %186 = math.tanh %185 : vector<8x32xf32>
    %cst_64 = arith.constant 1.000000e+00 : f32
    %187 = vector.broadcast %cst_64 : f32 to vector<8x32xf32>
    %188 = arith.subf %187, %181 : vector<8x32xf32>
    %189 = arith.mulf %188, %186 : vector<8x32xf32>
    %190 = arith.mulf %181, %167 : vector<8x32xf32>
    %191 = arith.addf %189, %190 : vector<8x32xf32>
    %192 = arith.truncf %191 : vector<8x32xf32> to vector<8x32xbf16>
    %cst_65 = arith.constant dense<0.000000e+00> : vector<8x128xf32>
    %193 = tpu.matmul %192, %3, %cst_65 {dimension_numbers = #tpu.dot_dimension_numbers<[1], [0], [0], [1], [0, 0, 1, 1], [], []>} : vector<8x32xbf16>, vector<32x128xbf16>, vector<8x128xf32> -> vector<8x128xf32>
    %194 = vector.broadcast %12 : vector<1x128xf32> to vector<8x128xf32>
    %195 = arith.addf %193, %194 : vector<8x128xf32>
    %196 = vector.extract_strided_slice %70 {offsets = [40, 0], sizes = [8, 128], strides = [1, 1]} : vector<64x128xf32> to vector<8x128xf32>
    %197 = arith.addf %196, %195 : vector<8x128xf32>
    %198 = vector.extract_strided_slice %197 {offsets = [0, 0], sizes = [8, 64], strides = [1, 1]} : vector<8x128xf32> to vector<8x64xf32>
    %199 = arith.negf %198 : vector<8x64xf32>
    %200 = math.exp %199 : vector<8x64xf32>
    %cst_66 = arith.constant 1.000000e+00 : f32
    %201 = vector.broadcast %cst_66 : f32 to vector<8x64xf32>
    %202 = arith.addf %201, %200 : vector<8x64xf32>
    %203 = arith.divf %201, %202 : vector<8x64xf32>
    %204 = vector.extract_strided_slice %203 {offsets = [0, 0], sizes = [8, 32], strides = [1, 1]} : vector<8x64xf32> to vector<8x32xf32>
    %205 = vector.extract_strided_slice %203 {offsets = [0, 32], sizes = [8, 32], strides = [1, 1]} : vector<8x64xf32> to vector<8x32xf32>
    %206 = vector.extract_strided_slice %196 {offsets = [0, 64], sizes = [8, 32], strides = [1, 1]} : vector<8x128xf32> to vector<8x32xf32>
    %207 = vector.extract_strided_slice %195 {offsets = [0, 64], sizes = [8, 32], strides = [1, 1]} : vector<8x128xf32> to vector<8x32xf32>
    %208 = arith.mulf %204, %207 : vector<8x32xf32>
    %209 = arith.addf %206, %208 : vector<8x32xf32>
    %210 = math.tanh %209 : vector<8x32xf32>
    %cst_67 = arith.constant 1.000000e+00 : f32
    %211 = vector.broadcast %cst_67 : f32 to vector<8x32xf32>
    %212 = arith.subf %211, %205 : vector<8x32xf32>
    %213 = arith.mulf %212, %210 : vector<8x32xf32>
    %214 = arith.mulf %205, %191 : vector<8x32xf32>
    %215 = arith.addf %213, %214 : vector<8x32xf32>
    %216 = arith.truncf %215 : vector<8x32xf32> to vector<8x32xbf16>
    %cst_68 = arith.constant dense<0.000000e+00> : vector<8x128xf32>
    %217 = tpu.matmul %216, %3, %cst_68 {dimension_numbers = #tpu.dot_dimension_numbers<[1], [0], [0], [1], [0, 0, 1, 1], [], []>} : vector<8x32xbf16>, vector<32x128xbf16>, vector<8x128xf32> -> vector<8x128xf32>
    %218 = vector.broadcast %12 : vector<1x128xf32> to vector<8x128xf32>
    %219 = arith.addf %217, %218 : vector<8x128xf32>
    %220 = vector.extract_strided_slice %70 {offsets = [48, 0], sizes = [8, 128], strides = [1, 1]} : vector<64x128xf32> to vector<8x128xf32>
    %221 = arith.addf %220, %219 : vector<8x128xf32>
    %222 = vector.extract_strided_slice %221 {offsets = [0, 0], sizes = [8, 64], strides = [1, 1]} : vector<8x128xf32> to vector<8x64xf32>
    %223 = arith.negf %222 : vector<8x64xf32>
    %224 = math.exp %223 : vector<8x64xf32>
    %cst_69 = arith.constant 1.000000e+00 : f32
    %225 = vector.broadcast %cst_69 : f32 to vector<8x64xf32>
    %226 = arith.addf %225, %224 : vector<8x64xf32>
    %227 = arith.divf %225, %226 : vector<8x64xf32>
    %228 = vector.extract_strided_slice %227 {offsets = [0, 0], sizes = [8, 32], strides = [1, 1]} : vector<8x64xf32> to vector<8x32xf32>
    %229 = vector.extract_strided_slice %227 {offsets = [0, 32], sizes = [8, 32], strides = [1, 1]} : vector<8x64xf32> to vector<8x32xf32>
    %230 = vector.extract_strided_slice %220 {offsets = [0, 64], sizes = [8, 32], strides = [1, 1]} : vector<8x128xf32> to vector<8x32xf32>
    %231 = vector.extract_strided_slice %219 {offsets = [0, 64], sizes = [8, 32], strides = [1, 1]} : vector<8x128xf32> to vector<8x32xf32>
    %232 = arith.mulf %228, %231 : vector<8x32xf32>
    %233 = arith.addf %230, %232 : vector<8x32xf32>
    %234 = math.tanh %233 : vector<8x32xf32>
    %cst_70 = arith.constant 1.000000e+00 : f32
    %235 = vector.broadcast %cst_70 : f32 to vector<8x32xf32>
    %236 = arith.subf %235, %229 : vector<8x32xf32>
    %237 = arith.mulf %236, %234 : vector<8x32xf32>
    %238 = arith.mulf %229, %215 : vector<8x32xf32>
    %239 = arith.addf %237, %238 : vector<8x32xf32>
    %240 = arith.truncf %239 : vector<8x32xf32> to vector<8x32xbf16>
    %cst_71 = arith.constant dense<0.000000e+00> : vector<8x128xf32>
    %241 = tpu.matmul %240, %3, %cst_71 {dimension_numbers = #tpu.dot_dimension_numbers<[1], [0], [0], [1], [0, 0, 1, 1], [], []>} : vector<8x32xbf16>, vector<32x128xbf16>, vector<8x128xf32> -> vector<8x128xf32>
    %242 = vector.broadcast %12 : vector<1x128xf32> to vector<8x128xf32>
    %243 = arith.addf %241, %242 : vector<8x128xf32>
    %244 = vector.extract_strided_slice %70 {offsets = [56, 0], sizes = [8, 128], strides = [1, 1]} : vector<64x128xf32> to vector<8x128xf32>
    %245 = arith.addf %244, %243 : vector<8x128xf32>
    %246 = vector.extract_strided_slice %245 {offsets = [0, 0], sizes = [8, 64], strides = [1, 1]} : vector<8x128xf32> to vector<8x64xf32>
    %247 = arith.negf %246 : vector<8x64xf32>
    %248 = math.exp %247 : vector<8x64xf32>
    %cst_72 = arith.constant 1.000000e+00 : f32
    %249 = vector.broadcast %cst_72 : f32 to vector<8x64xf32>
    %250 = arith.addf %249, %248 : vector<8x64xf32>
    %251 = arith.divf %249, %250 : vector<8x64xf32>
    %252 = vector.extract_strided_slice %251 {offsets = [0, 0], sizes = [8, 32], strides = [1, 1]} : vector<8x64xf32> to vector<8x32xf32>
    %253 = vector.extract_strided_slice %251 {offsets = [0, 32], sizes = [8, 32], strides = [1, 1]} : vector<8x64xf32> to vector<8x32xf32>
    %254 = vector.extract_strided_slice %244 {offsets = [0, 64], sizes = [8, 32], strides = [1, 1]} : vector<8x128xf32> to vector<8x32xf32>
    %255 = vector.extract_strided_slice %243 {offsets = [0, 64], sizes = [8, 32], strides = [1, 1]} : vector<8x128xf32> to vector<8x32xf32>
    %256 = arith.mulf %252, %255 : vector<8x32xf32>
    %257 = arith.addf %254, %256 : vector<8x32xf32>
    %258 = math.tanh %257 : vector<8x32xf32>
    %cst_73 = arith.constant 1.000000e+00 : f32
    %259 = vector.broadcast %cst_73 : f32 to vector<8x32xf32>
    %260 = arith.subf %259, %253 : vector<8x32xf32>
    %261 = arith.mulf %260, %258 : vector<8x32xf32>
    %262 = arith.mulf %253, %239 : vector<8x32xf32>
    %263 = arith.addf %261, %262 : vector<8x32xf32>
    %264 = tpu.concatenate %95, %119, %143, %167, %191, %215, %239, %263 in 0 : vector<8x32xf32>, vector<8x32xf32>, vector<8x32xf32>, vector<8x32xf32>, vector<8x32xf32>, vector<8x32xf32>, vector<8x32xf32>, vector<8x32xf32> -> vector<64x32xf32>
    %265 = arith.truncf %264 : vector<64x32xf32> to vector<64x32xbf16>
    %cst_74 = arith.constant dense<0.000000e+00> : vector<64x128xf32>
    %266 = tpu.matmul %265, %5, %cst_74 {dimension_numbers = #tpu.dot_dimension_numbers<[1], [0], [0], [1], [0, 0, 1, 1], [], []>} : vector<64x32xbf16>, vector<32x128xbf16>, vector<64x128xf32> -> vector<64x128xf32>
    %267 = arith.truncf %263 : vector<8x32xf32> to vector<8x32xbf16>
    %cst_75 = arith.constant dense<0.000000e+00> : vector<8x128xf32>
    %268 = tpu.matmul %267, %7, %cst_75 {dimension_numbers = #tpu.dot_dimension_numbers<[1], [0], [0], [1], [0, 0, 1, 1], [], []>} : vector<8x32xbf16>, vector<32x128xbf16>, vector<8x128xf32> -> vector<8x128xf32>
    %269 = vector.broadcast %13 : vector<1x128xf32> to vector<8x128xf32>
    %270 = arith.addf %268, %269 : vector<8x128xf32>
    %271 = tpu.concatenate %270, %270, %270, %270, %270, %270, %270, %270 in 0 : vector<8x128xf32>, vector<8x128xf32>, vector<8x128xf32>, vector<8x128xf32>, vector<8x128xf32>, vector<8x128xf32>, vector<8x128xf32>, vector<8x128xf32> -> vector<64x128xf32>
    %272 = arith.addf %266, %271 : vector<64x128xf32>
    %273 = math.tanh %272 : vector<64x128xf32>
    %cst_76 = arith.constant dense<0.000000e+00> : vector<64x1xf32>
    %274 = tpu.matmul %273, %9, %cst_76 {dimension_numbers = #tpu.dot_dimension_numbers<[1], [0], [0], [1], [0, 0, 1, 1], [], []>} : vector<64x128xf32>, vector<128x1xf32>, vector<64x1xf32> -> vector<64x1xf32>
    %275 = vector.extract_strided_slice %274 {offsets = [0, 0], sizes = [8, 1], strides = [1, 1]} : vector<64x1xf32> to vector<8x1xf32>
    %276 = vector.extract_strided_slice %274 {offsets = [8, 0], sizes = [8, 1], strides = [1, 1]} : vector<64x1xf32> to vector<8x1xf32>
    %277 = vector.extract_strided_slice %274 {offsets = [16, 0], sizes = [8, 1], strides = [1, 1]} : vector<64x1xf32> to vector<8x1xf32>
    %278 = vector.extract_strided_slice %274 {offsets = [24, 0], sizes = [8, 1], strides = [1, 1]} : vector<64x1xf32> to vector<8x1xf32>
    %279 = vector.extract_strided_slice %274 {offsets = [32, 0], sizes = [8, 1], strides = [1, 1]} : vector<64x1xf32> to vector<8x1xf32>
    %280 = vector.extract_strided_slice %274 {offsets = [40, 0], sizes = [8, 1], strides = [1, 1]} : vector<64x1xf32> to vector<8x1xf32>
    %281 = vector.extract_strided_slice %274 {offsets = [48, 0], sizes = [8, 1], strides = [1, 1]} : vector<64x1xf32> to vector<8x1xf32>
    %282 = vector.extract_strided_slice %274 {offsets = [56, 0], sizes = [8, 1], strides = [1, 1]} : vector<64x1xf32> to vector<8x1xf32>
    %283 = tpu.concatenate %275, %276, %277, %278, %279, %280, %281, %282 in 1 : vector<8x1xf32>, vector<8x1xf32>, vector<8x1xf32>, vector<8x1xf32>, vector<8x1xf32>, vector<8x1xf32>, vector<8x1xf32>, vector<8x1xf32> -> vector<8x8xf32>
    %cst_77 = arith.constant dense<0xFF800000> : vector<8xf32>
    %284 = vector.multi_reduction <maximumf>, %283, %cst_77 [1] : vector<8x8xf32> to vector<8xf32>
    %285 = vector.shape_cast %284 : vector<8xf32> to vector<8x1xf32>
    %286 = vector.broadcast %285 : vector<8x1xf32> to vector<8x8xf32>
    %287 = arith.subf %283, %286 : vector<8x8xf32>
    %288 = math.exp %287 : vector<8x8xf32>
    %cst_78 = arith.constant dense<0.000000e+00> : vector<8xf32>
    %289 = vector.multi_reduction <add>, %288, %cst_78 [1] : vector<8x8xf32> to vector<8xf32>
    %290 = vector.shape_cast %289 : vector<8xf32> to vector<8x1xf32>
    %291 = tpu.reciprocal %290 {approx = true} : vector<8x1xf32> -> vector<8x1xf32>
    %292 = vector.broadcast %291 : vector<8x1xf32> to vector<8x8xf32>
    %293 = arith.mulf %288, %292 : vector<8x8xf32>
    %cst_79 = arith.constant 0.000000e+00 : f32
    %294 = vector.broadcast %cst_79 : f32 to vector<8x32xf32>
    %295 = vector.extract_strided_slice %293 {offsets = [0, 0], sizes = [8, 1], strides = [1, 1]} : vector<8x8xf32> to vector<8x1xf32>
    %296 = vector.broadcast %295 : vector<8x1xf32> to vector<8x32xf32>
    %297 = arith.mulf %296, %95 : vector<8x32xf32>
    %298 = arith.addf %294, %297 : vector<8x32xf32>
    %299 = vector.extract_strided_slice %293 {offsets = [0, 1], sizes = [8, 1], strides = [1, 1]} : vector<8x8xf32> to vector<8x1xf32>
    %300 = vector.broadcast %299 : vector<8x1xf32> to vector<8x32xf32>
    %301 = arith.mulf %300, %119 : vector<8x32xf32>
    %302 = arith.addf %298, %301 : vector<8x32xf32>
    %303 = vector.extract_strided_slice %293 {offsets = [0, 2], sizes = [8, 1], strides = [1, 1]} : vector<8x8xf32> to vector<8x1xf32>
    %304 = vector.broadcast %303 : vector<8x1xf32> to vector<8x32xf32>
    %305 = arith.mulf %304, %143 : vector<8x32xf32>
    %306 = arith.addf %302, %305 : vector<8x32xf32>
    %307 = vector.extract_strided_slice %293 {offsets = [0, 3], sizes = [8, 1], strides = [1, 1]} : vector<8x8xf32> to vector<8x1xf32>
    %308 = vector.broadcast %307 : vector<8x1xf32> to vector<8x32xf32>
    %309 = arith.mulf %308, %167 : vector<8x32xf32>
    %310 = arith.addf %306, %309 : vector<8x32xf32>
    %311 = vector.extract_strided_slice %293 {offsets = [0, 4], sizes = [8, 1], strides = [1, 1]} : vector<8x8xf32> to vector<8x1xf32>
    %312 = vector.broadcast %311 : vector<8x1xf32> to vector<8x32xf32>
    %313 = arith.mulf %312, %191 : vector<8x32xf32>
    %314 = arith.addf %310, %313 : vector<8x32xf32>
    %315 = vector.extract_strided_slice %293 {offsets = [0, 5], sizes = [8, 1], strides = [1, 1]} : vector<8x8xf32> to vector<8x1xf32>
    %316 = vector.broadcast %315 : vector<8x1xf32> to vector<8x32xf32>
    %317 = arith.mulf %316, %215 : vector<8x32xf32>
    %318 = arith.addf %314, %317 : vector<8x32xf32>
    %319 = vector.extract_strided_slice %293 {offsets = [0, 6], sizes = [8, 1], strides = [1, 1]} : vector<8x8xf32> to vector<8x1xf32>
    %320 = vector.broadcast %319 : vector<8x1xf32> to vector<8x32xf32>
    %321 = arith.mulf %320, %239 : vector<8x32xf32>
    %322 = arith.addf %318, %321 : vector<8x32xf32>
    %323 = vector.extract_strided_slice %293 {offsets = [0, 7], sizes = [8, 1], strides = [1, 1]} : vector<8x8xf32> to vector<8x1xf32>
    %324 = vector.broadcast %323 : vector<8x1xf32> to vector<8x32xf32>
    %325 = arith.mulf %324, %263 : vector<8x32xf32>
    %326 = arith.addf %322, %325 : vector<8x32xf32>
    %cst_80 = arith.constant dense<0.000000e+00> : vector<8x128xf32>
    %327 = tpu.matmul %326, %8, %cst_80 {dimension_numbers = #tpu.dot_dimension_numbers<[1], [0], [0], [1], [0, 0, 1, 1], [], []>} : vector<8x32xf32>, vector<32x128xf32>, vector<8x128xf32> -> vector<8x128xf32>
    %328 = vector.broadcast %14 : vector<1x128xf32> to vector<8x128xf32>
    %329 = arith.addf %327, %328 : vector<8x128xf32>
    %c0_81 = arith.constant 0 : index
    %c0_82 = arith.constant 0 : index
    %330 = vector.load %arg3[%c0_81, %c0_82] : memref<8x128xf32, #tpu.memory_space<vmem>>, vector<8x128xf32>
    tpu.vector_store %arg3[%c0_81, %c0_82], %329 {strides = array<i32>} : memref<8x128xf32, #tpu.memory_space<vmem>>, vector<8x128xf32>,
    return
  }
}

</mosaic_0001>

<llo_original>
// kernel: rnn_forward.1
$region0: #{rnn_forward.1}
  #allocation0 [shape = 'u32[]', space=smem, size = 0x4, offset = 0x4, fixed_abs, tag = 'smem constant byte address 0x4 - core index']
  #allocation1 [shape = 'u32[144,128]{1,0:T(1,128)}', space=vmem, size = 0x12000, scoped, tag = 'internal scratch']
  %s0 = inlined_call_operand.vmem [shape: s32[8,2], index: 0, kind: input, shape index: {}]
  %s1 = inlined_call_operand.vmem [shape: f32[64,32], index: 1, kind: input, shape index: {}]
  %s2 = inlined_call_operand.hbm [shape: f32[296,128], index: 2, kind: input, shape index: {}]
  %s3 = inlined_call_operand.vmem [shape: f32[8,128], index: 3, kind: output, shape index: {}]
  %s4 = sld [smem:[#allocation0]]
  $region30: #{rnn_forward.1} parent=0
    _
  %s6 = ssub.s32 1, %s4
  %s7 = scalar_select 0, %s6, %s4
  $region1: #{rnn_forward.1} parent=0
    #allocation2 [shape = 'u8[4096]{0}', space=smem, size = 0x1000, scoped, tag = 'input window, operand 0, single buffered']
    #allocation3 [shape = 's32[1]{0}', space=sflag, size = 0x4, scoped, tag = 'scoped memory for rnn_forward.1']
    #allocation4 [shape = 's32[1]{0}', space=sflag, size = 0x4, scoped, tag = 'scoped memory for rnn_forward.1']
    #allocation5 [shape = 'u8[151552]{0}', space=vmem, size = 0x25000, scoped, tag = 'input window, operand 2, single buffered']
    %8 = vsyncpa [#allocation4], 0
    %9 = vsyncpa [#allocation3], 0
    // Predicated region
    $region2: #{rnn_forward.1} parent=1 // pred_check
      _
    $region3: #{rnn_forward.1} parent=1 // pred_check_branch
      %11 = sbr.rel (0) target = $region5
    $region4: #{rnn_forward.1} parent=1 // pred_region
      %s13 = ssub.s32 128, 128
      %14 = vsyncadd [#allocation4], %s13
      %s16 = sshll.u32 %s0, 4
      %s17 = int_to_ptr.vmem [resolvable:$true] %s16
      %19 = dma.vmem_to_smem %s17, 128, [#allocation2], [#allocation4]
    $region5: #{rnn_forward.1} parent=1 // pred_fallthru
      _
    // Predicated region
    $region6: #{rnn_forward.1} parent=1 // pred_check
      _
    $region7: #{rnn_forward.1} parent=1 // pred_check_branch
      %21 = sbr.rel (0) target = $region9
    $region8: #{rnn_forward.1} parent=1 // pred_region
      _
    $region9: #{rnn_forward.1} parent=1 // pred_fallthru
      _
    // Predicated region
    $region10: #{rnn_forward.1} parent=1 // pred_check
      _
    $region11: #{rnn_forward.1} parent=1 // pred_check_branch
      %23 = sbr.rel (0) target = $region13
    $region12: #{rnn_forward.1} parent=1 // pred_region
      %s25 = ssub.s32 4736, 4736
      %26 = vsyncadd [#allocation3], %s25
      %s27 = sshll.u32 [#allocation5], 4
      %s28 = int_to_ptr.vmem [resolvable:$true] %s27
      %33 = dma.hbm_to_vmem [thread:$0]  %s2, 4736, %s28, [#allocation3], 128, 128, 8
    $region13: #{rnn_forward.1} parent=1 // pred_fallthru
      _
    // Predicated region
    $region14: #{rnn_forward.1} parent=1 // pred_check
      _
    $region15: #{rnn_forward.1} parent=1 // pred_check_branch
      %35 = sbr.rel (0) target = $region17
    $region16: #{rnn_forward.1} parent=1 // pred_region
      %36 = dma.done [#allocation4], 128
    $region17: #{rnn_forward.1} parent=1 // pred_fallthru
      _
    // Predicated region
    $region18: #{rnn_forward.1} parent=1 // pred_check
      _
    $region19: #{rnn_forward.1} parent=1 // pred_check_branch
      %38 = sbr.rel (0) target = $region21
    $region20: #{rnn_forward.1} parent=1 // pred_region
      %39 = dma.done [#allocation3], 4736
    $region21: #{rnn_forward.1} parent=1 // pred_fallthru
      _
    %40 = sfence
    %v42 = vld [vmem:[#allocation5] sm:$0xff]
    %v43 = vld [vmem:[#allocation5 + $0x8] sm:$0xff]
    %v44 = vld [vmem:[#allocation5 + $0x10] sm:$0xff]
    %v45 = vld [vmem:[#allocation5 + $0x18] sm:$0xff]
    %v46 = vpack.c.bf16 %v43, %v42
    %v47 = vpack.c.bf16 %v45, %v44
    %v48 = vld [vmem:[#allocation5 + $0x20] sm:$0xff]
    %v49 = vld [vmem:[#allocation5 + $0x28] sm:$0xff]
    %v50 = vld [vmem:[#allocation5 + $0x30] sm:$0xff]
    %v51 = vld [vmem:[#allocation5 + $0x38] sm:$0xff]
    %v52 = vpack.c.bf16 %v49, %v48
    %v53 = vpack.c.bf16 %v51, %v50
    %v54 = vld [vmem:[#allocation5 + $0x40] sm:$0xff]
    %v55 = vld [vmem:[#allocation5 + $0x48] sm:$0xff]
    %v56 = vld [vmem:[#allocation5 + $0x50] sm:$0xff]
    %v57 = vld [vmem:[#allocation5 + $0x58] sm:$0xff]
    %v58 = vpack.c.bf16 %v55, %v54
    %v59 = vpack.c.bf16 %v57, %v56
    %v60 = vld [vmem:[#allocation5 + $0x60] sm:$0xff]
    %v61 = vld [vmem:[#allocation5 + $0x68] sm:$0xff]
    %v62 = vld [vmem:[#allocation5 + $0x70] sm:$0xff]
    %v63 = vld [vmem:[#allocation5 + $0x78] sm:$0xff]
    %v64 = vpack.c.bf16 %v61, %v60
    %v65 = vpack.c.bf16 %v63, %v62
    %v66 = vld [vmem:[#allocation5 + $0x80] sm:$0xff]
    %v67 = vld [vmem:[#allocation5 + $0x88] sm:$0xff]
    %v68 = vld [vmem:[#allocation5 + $0x90] sm:$0xff]
    %v69 = vld [vmem:[#allocation5 + $0x98] sm:$0xff]
    %v70 = vld [vmem:[#allocation5 + $0xa0] sm:$0xff]
    %v71 = vld [vmem:[#allocation5 + $0xa8] sm:$0xff]
    %v72 = vld [vmem:[#allocation5 + $0xb0] sm:$0xff]
    %v73 = vld [vmem:[#allocation5 + $0xb8] sm:$0xff]
    %v74 = vld [vmem:[#allocation5 + $0xc0] sm:$0xff]
    %v75 = vld [vmem:[#allocation5 + $0xc8] sm:$0xff]
    %v76 = vld [vmem:[#allocation5 + $0xd0] sm:$0xff]
    %v77 = vld [vmem:[#allocation5 + $0xd8] sm:$0xff]
    %v78 = vld [vmem:[#allocation5 + $0xe0] sm:$0xff]
    %v79 = vld [vmem:[#allocation5 + $0xe8] sm:$0xff]
    %v80 = vld [vmem:[#allocation5 + $0xf0] sm:$0xff]
    %v81 = vld [vmem:[#allocation5 + $0xf8] sm:$0xff]
    %v82 = vld [vmem:[#allocation5 + $0x100] sm:$0xff]
    %v83 = vld [vmem:[#allocation5 + $0x108] sm:$0xff]
    %v84 = vld [vmem:[#allocation5 + $0x110] sm:$0xff]
    %v85 = vld [vmem:[#allocation5 + $0x118] sm:$0xff]
    %v86 = vld [vmem:[#allocation5 + $0x120] sm:$0xff]
    %s87 = sld [smem:[#allocation2]]
    %s88 = scalar_lea.vmem %s1, %s87
    %v89 = vld [vmem:[%s88] sm:$0x1]
    %s90 = sld [smem:[#allocation2 + $0x1]]
    %s91 = scalar_lea.vmem %s1, %s90
    %v92 = vld [vmem:[%s91] sm:$0x1]
    %s93 = sld [smem:[#allocation2 + $0x80]]
    %s94 = scalar_lea.vmem %s1, %s93
    %v95 = vld [vmem:[%s94] sm:$0x1]
    %s96 = sld [smem:[#allocation2 + $0x81]]
    %s97 = scalar_lea.vmem %s1, %s96
    %v98 = vld [vmem:[%s97] sm:$0x1]
    %s99 = sld [smem:[#allocation2 + $0x100]]
    %s100 = scalar_lea.vmem %s1, %s99
    %v101 = vld [vmem:[%s100] sm:$0x1]
    %s102 = sld [smem:[#allocation2 + $0x101]]
    %s103 = scalar_lea.vmem %s1, %s102
    %v104 = vld [vmem:[%s103] sm:$0x1]
    %s105 = sld [smem:[#allocation2 + $0x180]]
    %s106 = scalar_lea.vmem %s1, %s105
    %v107 = vld [vmem:[%s106] sm:$0x1]
    %s108 = sld [smem:[#allocation2 + $0x181]]
    %s109 = scalar_lea.vmem %s1, %s108
    %v110 = vld [vmem:[%s109] sm:$0x1]
    %s111 = sld [smem:[#allocation2 + $0x200]]
    %s112 = scalar_lea.vmem %s1, %s111
    %v113 = vld [vmem:[%s112] sm:$0x1]
    %s114 = sld [smem:[#allocation2 + $0x201]]
    %s115 = scalar_lea.vmem %s1, %s114
    %v116 = vld [vmem:[%s115] sm:$0x1]
    %s117 = sld [smem:[#allocation2 + $0x280]]
    %s118 = scalar_lea.vmem %s1, %s117
    %v119 = vld [vmem:[%s118] sm:$0x1]
    %s120 = sld [smem:[#allocation2 + $0x281]]
    %s121 = scalar_lea.vmem %s1, %s120
    %v122 = vld [vmem:[%s121] sm:$0x1]
    %s123 = sld [smem:[#allocation2 + $0x300]]
    %s124 = scalar_lea.vmem %s1, %s123
    %v125 = vld [vmem:[%s124] sm:$0x1]
    %s126 = sld [smem:[#allocation2 + $0x301]]
    %s127 = scalar_lea.vmem %s1, %s126
    %v128 = vld [vmem:[%s127] sm:$0x1]
    %s129 = sld [smem:[#allocation2 + $0x380]]
    %s130 = scalar_lea.vmem %s1, %s129
    %v131 = vld [vmem:[%s130] sm:$0x1]
    %s132 = sld [smem:[#allocation2 + $0x381]]
    %s133 = scalar_lea.vmem %s1, %s132
    %v134 = vld [vmem:[%s133] sm:$0x1]
    %v136 = vrot.slane %v92, 7
    %v139 = vrot.slane %v98, 7
    %v142 = vrot.slane %v104, 7
    %v145 = vrot.slane %v110, 7
    %v148 = vrot.slane %v116, 7
    %vm150 = vcmask 1040384
    %v151 = vsel %vm150, %v89, %v136
    %vm152 = vcmask 1041408
    %v153 = vsel %vm152, %v151, 0.0
    %v154 = vsel %vm150, %v95, %v139
    %v155 = vsel %vm152, %v154, 0.0
    %v156 = vsel %vm150, %v101, %v142
    %v157 = vsel %vm152, %v156, 0.0
    %v158 = vsel %vm150, %v107, %v145
    %v159 = vsel %vm152, %v158, 0.0
    %v160 = vsel %vm150, %v113, %v148
    %v161 = vsel %vm152, %v160, 0.0
    %v163 = vrot.slane %v125, 1
    %v166 = vrot.slane %v131, 1
    %v168 = vsel %vm150, %v122, 0.0
    %vm169 = vcmask 1046528
    %v170 = vsel %vm169, %v168, %v163
    %v171 = vsel %vm150, %v128, 0.0
    %v172 = vsel %vm169, %v171, %v166
    %v173 = vsel %vm150, %v134, 0.0
    %v177 = vrot.slane %v170, 7
    %v178 = vrot.slane %v172, 7
    %v179 = vsel %vm150, %v177, %v178
    %v180 = vrot.slane %v173, 7
    %v181 = vsel %vm150, %v178, %v180
    %v185 = vsel %vm150, %v119, %v177
    %v186 = vpack.c.bf16 %v155, %v153
    %v187 = vpack.c.bf16 %v159, %v157
    %v188 = vpack.c.bf16 %v185, %v161
    %v189 = vpack.c.bf16 %v181, %v179
    %v190 = vlaneseq
    %v191 = vshrl.u32 %v190, 7
    %v192 = vsub.s32 0, %v191
    %v193 = vrot.slane %v86, %v192
    %vm194 = vcmask 261120
    %v196 = vsel %vm194, %v186, 0
    %v199 = vsel %vm194, %v187, 0
    %v202 = vsel %vm194, %v188, 0
    %v205 = vsel %vm194, %v189, 0
    %207 = vmatprep.subr.bf16.mxu0 0
    %208 = vmatpush1.bf16.msra.mxu0 %v46
    %209 = vmatprep.subr.bf16.mxu0 0
    %210 = vmatpush1.bf16.msra.mxu0 %v47
    %211 = vmatprep.subr.bf16.mxu0 0
    %212 = vmatpush1.bf16.msra.mxu0 0
    %213 = vmatprep.subr.bf16.mxu0 0
    %214 = vmatpush1.bf16.msra.mxu0 0
    %215 = vmatprep.subr.bf16.mxu0 0
    %216 = vmatpush1.bf16.msra.mxu0 0
    %217 = vmatprep.subr.bf16.mxu0 0
    %218 = vmatpush1.bf16.msra.mxu0 0
    %219 = vmatprep.subr.bf16.mxu0 0
    %220 = vmatpush1.bf16.msra.mxu0 0
    %221 = vmatprep.subr.bf16.mxu0 0
    %222 = vmatpush1.bf16.msra.mxu0 0
    %223 = vmatprep.subr.bf16.mxu0 0
    %224 = vmatpush1.bf16.msra.mxu0 0
    %225 = vmatprep.subr.bf16.mxu0 0
    %226 = vmatpush1.bf16.msra.mxu0 0
    %227 = vmatprep.subr.bf16.mxu0 0
    %228 = vmatpush1.bf16.msra.mxu0 0
    %229 = vmatprep.subr.bf16.mxu0 0
    %230 = vmatpush1.bf16.msra.mxu0 0
    %231 = vmatprep.subr.bf16.mxu0 0
    %232 = vmatpush1.bf16.msra.mxu0 0
    %233 = vmatprep.subr.bf16.mxu0 0
    %234 = vmatpush1.bf16.msra.mxu0 0
    %235 = vmatprep.subr.bf16.mxu0 0
    %236 = vmatpush1.bf16.msra.mxu0 0
    %237 = vmatprep.subr.bf16.mxu0 0
    %238 = vmatpush1.bf16.msra.mxu0 0
    %239 = vmatprep.mubr.bf16.mxu0 0
    %240 = vmatmul.mubr.bf16.gmra.mrb[0].mxu0 %v196
    %v241 = vpop.f32.mrb[0].mxu0
    %v242 = vadd.f32 %v193, %v241
    %v243 = vpop.f32.mrb[0].mxu0
    %v244 = vpop.f32.mrb[0].mxu0
    %v245 = vadd.f32 %v193, %v244
    %v246 = vpop.f32.mrb[0].mxu0
    %247 = vmatprep.mubr.bf16.mxu0 0
    %248 = vmatmul.mubr.bf16.gmra.mrb[0].mxu0 %v199
    %v249 = vpop.f32.mrb[0].mxu0
    %v250 = vadd.f32 %v193, %v249
    %v251 = vpop.f32.mrb[0].mxu0
    %v252 = vpop.f32.mrb[0].mxu0
    %v253 = vadd.f32 %v193, %v252
    %v254 = vpop.f32.mrb[0].mxu0
    %255 = vmatprep.mubr.bf16.mxu0 0
    %256 = vmatmul.mubr.bf16.gmra.mrb[0].mxu0 %v202
    %v257 = vpop.f32.mrb[0].mxu0
    %v258 = vadd.f32 %v193, %v257
    %v259 = vpop.f32.mrb[0].mxu0
    %v260 = vpop.f32.mrb[0].mxu0
    %v261 = vadd.f32 %v193, %v260
    %v262 = vpop.f32.mrb[0].mxu0
    %263 = vmatprep.mubr.bf16.mxu0 0
    %264 = vmatmul.mubr.bf16.gmra.mrb[0].mxu0 %v205
    %v265 = vpop.f32.mrb[0].mxu0
    %v266 = vadd.f32 %v193, %v265
    %v267 = vpop.f32.mrb[0].mxu0
    %v268 = vpop.f32.mrb[0].mxu0
    %v269 = vadd.f32 %v193, %v268
    %v270 = vpop.f32.mrb[0].mxu0
    %271 = vdwg.mxu0
    %v272 = vlaneseq
    %v273 = vshrl.u32 %v272, 7
    %v274 = vsub.s32 1, %v273
    %v275 = vrot.slane %v86, %v274
    %v277 = vsel %vm194, 0, 0
    %279 = vmatprep.subr.bf16.mxu0 0
    %280 = vmatpush1.bf16.msra.mxu0 %v52
    %281 = vmatprep.subr.bf16.mxu0 0
    %282 = vmatpush1.bf16.msra.mxu0 %v53
    %283 = vmatprep.subr.bf16.mxu0 0
    %284 = vmatpush1.bf16.msra.mxu0 0
    %285 = vmatprep.subr.bf16.mxu0 0
    %286 = vmatpush1.bf16.msra.mxu0 0
    %287 = vmatprep.subr.bf16.mxu0 0
    %288 = vmatpush1.bf16.msra.mxu0 0
    %289 = vmatprep.subr.bf16.mxu0 0
    %290 = vmatpush1.bf16.msra.mxu0 0
    %291 = vmatprep.subr.bf16.mxu0 0
    %292 = vmatpush1.bf16.msra.mxu0 0
    %293 = vmatprep.subr.bf16.mxu0 0
    %294 = vmatpush1.bf16.msra.mxu0 0
    %295 = vmatprep.subr.bf16.mxu0 0
    %296 = vmatpush1.bf16.msra.mxu0 0
    %297 = vmatprep.subr.bf16.mxu0 0
    %298 = vmatpush1.bf16.msra.mxu0 0
    %299 = vmatprep.subr.bf16.mxu0 0
    %300 = vmatpush1.bf16.msra.mxu0 0
    %301 = vmatprep.subr.bf16.mxu0 0
    %302 = vmatpush1.bf16.msra.mxu0 0
    %303 = vmatprep.subr.bf16.mxu0 0
    %304 = vmatpush1.bf16.msra.mxu0 0
    %305 = vmatprep.subr.bf16.mxu0 0
    %306 = vmatpush1.bf16.msra.mxu0 0
    %307 = vmatprep.subr.bf16.mxu0 0
    %308 = vmatpush1.bf16.msra.mxu0 0
    %309 = vmatprep.subr.bf16.mxu0 0
    %310 = vmatpush1.bf16.msra.mxu0 0
    %311 = vmatprep.mubr.bf16.mxu0 0
    %312 = vmatmul.mubr.bf16.gmra.mrb[0].mxu0 %v277
    %v313 = vpop.f32.mrb[0].mxu0
    %v314 = vadd.f32 %v275, %v313
    %v315 = vpop.f32.mrb[0].mxu0
    %v316 = vpop.f32.mrb[0].mxu0
    %v317 = vpop.f32.mrb[0].mxu0
    %318 = vdwg.mxu0
    %v319 = vadd.f32 %v242, %v314
    %v320 = vxor.u32 %v319, 2147483648
    %v321 = vmul.f32 %v320, 1.442695
    %v322 = vpow.pop %v321
    %v323 = vadd.f32 %v322, 1.0
    %v324 = vrcp.pop %v323
    %v325 = vmul.f32 1.0, %v324
    %327 = vrot.lane.b32.xlu0 %v314, 64
    %v328 = vpop.permute.xlu0 %327
    %v330 = vmul.f32 %v325, %v328
    %332 = vrot.lane.b32.xlu0 %v330, 64
    %v333 = vpop.permute.xlu0 %332
    %v335 = vadd.f32 %v242, %v333
    %v336 = vtanh.pop %v335
    %v337 = vsub.f32 1.0, %v325
    %339 = vrot.lane.b32.xlu0 %v336, 96
    %v340 = vpop.permute.xlu0 %339
    %v342 = vmul.f32 %v337, %v340
    %v343 = vmul.f32 %v325, 0.0
    %v344 = vadd.f32 %v342, %v343
    %v345 = vpack.c.bf16 %v344, %v344
    %347 = vrot.lane.b32.xlu0 %v345, 96
    %v348 = vpop.permute.xlu0 %347
    %v350 = vsel %vm194, %v348, 0
    %352 = vmatprep.subr.bf16.mxu0 0
    %353 = vmatpush1.bf16.msra.mxu0 %v52
    %354 = vmatprep.subr.bf16.mxu0 0
    %355 = vmatpush1.bf16.msra.mxu0 %v53
    %356 = vmatprep.subr.bf16.mxu0 0
    %357 = vmatpush1.bf16.msra.mxu0 0
    %358 = vmatprep.subr.bf16.mxu0 0
    %359 = vmatpush1.bf16.msra.mxu0 0
    %360 = vmatprep.subr.bf16.mxu0 0
    %361 = vmatpush1.bf16.msra.mxu0 0
    %362 = vmatprep.subr.bf16.mxu0 0
    %363 = vmatpush1.bf16.msra.mxu0 0
    %364 = vmatprep.subr.bf16.mxu0 0
    %365 = vmatpush1.bf16.msra.mxu0 0
    %366 = vmatprep.subr.bf16.mxu0 0
    %367 = vmatpush1.bf16.msra.mxu0 0
    %368 = vmatprep.subr.bf16.mxu0 0
    %369 = vmatpush1.bf16.msra.mxu0 0
    %370 = vmatprep.subr.bf16.mxu0 0
    %371 = vmatpush1.bf16.msra.mxu0 0
    %372 = vmatprep.subr.bf16.mxu0 0
    %373 = vmatpush1.bf16.msra.mxu0 0
    %374 = vmatprep.subr.bf16.mxu0 0
    %375 = vmatpush1.bf16.msra.mxu0 0
    %376 = vmatprep.subr.bf16.mxu0 0
    %377 = vmatpush1.bf16.msra.mxu0 0
    %378 = vmatprep.subr.bf16.mxu0 0
    %379 = vmatpush1.bf16.msra.mxu0 0
    %380 = vmatprep.subr.bf16.mxu0 0
    %381 = vmatpush1.bf16.msra.mxu0 0
    %382 = vmatprep.subr.bf16.mxu0 0
    %383 = vmatpush1.bf16.msra.mxu0 0
    %384 = vmatprep.mubr.bf16.mxu0 0
    %385 = vmatmul.mubr.bf16.gmra.mrb[0].mxu0 %v350
    %v386 = vpop.f32.mrb[0].mxu0
    %v387 = vadd.f32 %v275, %v386
    %v388 = vpop.f32.mrb[0].mxu0
    %v389 = vpop.f32.mrb[0].mxu0
    %v390 = vpop.f32.mrb[0].mxu0
    %391 = vdwg.mxu0
    %v392 = vadd.f32 %v245, %v387
    %v393 = vxor.u32 %v392, 2147483648
    %v394 = vmul.f32 %v393, 1.442695
    %v395 = vpow.pop %v394
    %v396 = vadd.f32 %v395, 1.0
    %v397 = vrcp.pop %v396
    %v398 = vmul.f32 1.0, %v397
    %400 = vrot.lane.b32.xlu0 %v387, 64
    %v401 = vpop.permute.xlu0 %400
    %v403 = vmul.f32 %v398, %v401
    %405 = vrot.lane.b32.xlu0 %v403, 64
    %v406 = vpop.permute.xlu0 %405
    %v408 = vadd.f32 %v245, %v406
    %v409 = vtanh.pop %v408
    %v410 = vsub.f32 1.0, %v398
    %412 = vrot.lane.b32.xlu0 %v409, 96
    %v413 = vpop.permute.xlu0 %412
    %v415 = vmul.f32 %v410, %v413
    %v416 = vmul.f32 %v398, %v344
    %v417 = vadd.f32 %v415, %v416
    %v418 = vpack.c.bf16 %v417, %v417
    %420 = vrot.lane.b32.xlu0 %v418, 96
    %v421 = vpop.permute.xlu0 %420
    %v423 = vsel %vm194, %v421, 0
    %425 = vmatprep.subr.bf16.mxu0 0
    %426 = vmatpush1.bf16.msra.mxu0 %v52
    %427 = vmatprep.subr.bf16.mxu0 0
    %428 = vmatpush1.bf16.msra.mxu0 %v53
    %429 = vmatprep.subr.bf16.mxu0 0
    %430 = vmatpush1.bf16.msra.mxu0 0
    %431 = vmatprep.subr.bf16.mxu0 0
    %432 = vmatpush1.bf16.msra.mxu0 0
    %433 = vmatprep.subr.bf16.mxu0 0
    %434 = vmatpush1.bf16.msra.mxu0 0
    %435 = vmatprep.subr.bf16.mxu0 0
    %436 = vmatpush1.bf16.msra.mxu0 0
    %437 = vmatprep.subr.bf16.mxu0 0
    %438 = vmatpush1.bf16.msra.mxu0 0
    %439 = vmatprep.subr.bf16.mxu0 0
    %440 = vmatpush1.bf16.msra.mxu0 0
    %441 = vmatprep.subr.bf16.mxu0 0
    %442 = vmatpush1.bf16.msra.mxu0 0
    %443 = vmatprep.subr.bf16.mxu0 0
    %444 = vmatpush1.bf16.msra.mxu0 0
    %445 = vmatprep.subr.bf16.mxu0 0
    %446 = vmatpush1.bf16.msra.mxu0 0
    %447 = vmatprep.subr.bf16.mxu0 0
    %448 = vmatpush1.bf16.msra.mxu0 0
    %449 = vmatprep.subr.bf16.mxu0 0
    %450 = vmatpush1.bf16.msra.mxu0 0
    %451 = vmatprep.subr.bf16.mxu0 0
    %452 = vmatpush1.bf16.msra.mxu0 0
    %453 = vmatprep.subr.bf16.mxu0 0
    %454 = vmatpush1.bf16.msra.mxu0 0
    %455 = vmatprep.subr.bf16.mxu0 0
    %456 = vmatpush1.bf16.msra.mxu0 0
    %457 = vmatprep.mubr.bf16.mxu0 0
    %458 = vmatmul.mubr.bf16.gmra.mrb[0].mxu0 %v423
    %v459 = vpop.f32.mrb[0].mxu0
    %v460 = vadd.f32 %v275, %v459
    %v461 = vpop.f32.mrb[0].mxu0
    %v462 = vpop.f32.mrb[0].mxu0
    %v463 = vpop.f32.mrb[0].mxu0
    %464 = vdwg.mxu0
    %v465 = vadd.f32 %v250, %v460
    %v466 = vxor.u32 %v465, 2147483648
    %v467 = vmul.f32 %v466, 1.442695
    %v468 = vpow.pop %v467
    %v469 = vadd.f32 %v468, 1.0
    %v470 = vrcp.pop %v469
    %v471 = vmul.f32 1.0, %v470
    %473 = vrot.lane.b32.xlu0 %v460, 64
    %v474 = vpop.permute.xlu0 %473
    %v476 = vmul.f32 %v471, %v474
    %478 = vrot.lane.b32.xlu0 %v476, 64
    %v479 = vpop.permute.xlu0 %478
    %v481 = vadd.f32 %v250, %v479
    %v482 = vtanh.pop %v481
    %v483 = vsub.f32 1.0, %v471
    %485 = vrot.lane.b32.xlu0 %v482, 96
    %v486 = vpop.permute.xlu0 %485
    %v488 = vmul.f32 %v483, %v486
    %v489 = vmul.f32 %v471, %v417
    %v490 = vadd.f32 %v488, %v489
    %v491 = vpack.c.bf16 %v490, %v490
    %493 = vrot.lane.b32.xlu0 %v491, 96
    %v494 = vpop.permute.xlu0 %493
    %v496 = vsel %vm194, %v494, 0
    %498 = vmatprep.subr.bf16.mxu0 0
    %499 = vmatpush1.bf16.msra.mxu0 %v52
    %500 = vmatprep.subr.bf16.mxu0 0
    %501 = vmatpush1.bf16.msra.mxu0 %v53
    %502 = vmatprep.subr.bf16.mxu0 0
    %503 = vmatpush1.bf16.msra.mxu0 0
    %504 = vmatprep.subr.bf16.mxu0 0
    %505 = vmatpush1.bf16.msra.mxu0 0
    %506 = vmatprep.subr.bf16.mxu0 0
    %507 = vmatpush1.bf16.msra.mxu0 0
    %508 = vmatprep.subr.bf16.mxu0 0
    %509 = vmatpush1.bf16.msra.mxu0 0
    %510 = vmatprep.subr.bf16.mxu0 0
    %511 = vmatpush1.bf16.msra.mxu0 0
    %512 = vmatprep.subr.bf16.mxu0 0
    %513 = vmatpush1.bf16.msra.mxu0 0
    %514 = vmatprep.subr.bf16.mxu0 0
    %515 = vmatpush1.bf16.msra.mxu0 0
    %516 = vmatprep.subr.bf16.mxu0 0
    %517 = vmatpush1.bf16.msra.mxu0 0
    %518 = vmatprep.subr.bf16.mxu0 0
    %519 = vmatpush1.bf16.msra.mxu0 0
    %520 = vmatprep.subr.bf16.mxu0 0
    %521 = vmatpush1.bf16.msra.mxu0 0
    %522 = vmatprep.subr.bf16.mxu0 0
    %523 = vmatpush1.bf16.msra.mxu0 0
    %524 = vmatprep.subr.bf16.mxu0 0
    %525 = vmatpush1.bf16.msra.mxu0 0
    %526 = vmatprep.subr.bf16.mxu0 0
    %527 = vmatpush1.bf16.msra.mxu0 0
    %528 = vmatprep.subr.bf16.mxu0 0
    %529 = vmatpush1.bf16.msra.mxu0 0
    %530 = vmatprep.mubr.bf16.mxu0 0
    %531 = vmatmul.mubr.bf16.gmra.mrb[0].mxu0 %v496
    %v532 = vpop.f32.mrb[0].mxu0
    %v533 = vadd.f32 %v275, %v532
    %v534 = vpop.f32.mrb[0].mxu0
    %v535 = vpop.f32.mrb[0].mxu0
    %v536 = vpop.f32.mrb[0].mxu0
    %537 = vdwg.mxu0
    %v538 = vadd.f32 %v253, %v533
    %v539 = vxor.u32 %v538, 2147483648
    %v540 = vmul.f32 %v539, 1.442695
    %v541 = vpow.pop %v540
    %v542 = vadd.f32 %v541, 1.0
    %v543 = vrcp.pop %v542
    %v544 = vmul.f32 1.0, %v543
    %546 = vrot.lane.b32.xlu0 %v533, 64
    %v547 = vpop.permute.xlu0 %546
    %v549 = vmul.f32 %v544, %v547
    %551 = vrot.lane.b32.xlu0 %v549, 64
    %v552 = vpop.permute.xlu0 %551
    %v554 = vadd.f32 %v253, %v552
    %v555 = vtanh.pop %v554
    %v556 = vsub.f32 1.0, %v544
    %558 = vrot.lane.b32.xlu0 %v555, 96
    %v559 = vpop.permute.xlu0 %558
    %v561 = vmul.f32 %v556, %v559
    %v562 = vmul.f32 %v544, %v490
    %v563 = vadd.f32 %v561, %v562
    %v564 = vpack.c.bf16 %v563, %v563
    %566 = vrot.lane.b32.xlu0 %v564, 96
    %v567 = vpop.permute.xlu0 %566
    %v569 = vsel %vm194, %v567, 0
    %571 = vmatprep.subr.bf16.mxu0 0
    %572 = vmatpush1.bf16.msra.mxu0 %v52
    %573 = vmatprep.subr.bf16.mxu0 0
    %574 = vmatpush1.bf16.msra.mxu0 %v53
    %575 = vmatprep.subr.bf16.mxu0 0
    %576 = vmatpush1.bf16.msra.mxu0 0
    %577 = vmatprep.subr.bf16.mxu0 0
    %578 = vmatpush1.bf16.msra.mxu0 0
    %579 = vmatprep.subr.bf16.mxu0 0
    %580 = vmatpush1.bf16.msra.mxu0 0
    %581 = vmatprep.subr.bf16.mxu0 0
    %582 = vmatpush1.bf16.msra.mxu0 0
    %583 = vmatprep.subr.bf16.mxu0 0
    %584 = vmatpush1.bf16.msra.mxu0 0
    %585 = vmatprep.subr.bf16.mxu0 0
    %586 = vmatpush1.bf16.msra.mxu0 0
    %587 = vmatprep.subr.bf16.mxu0 0
    %588 = vmatpush1.bf16.msra.mxu0 0
    %589 = vmatprep.subr.bf16.mxu0 0
    %590 = vmatpush1.bf16.msra.mxu0 0
    %591 = vmatprep.subr.bf16.mxu0 0
    %592 = vmatpush1.bf16.msra.mxu0 0
    %593 = vmatprep.subr.bf16.mxu0 0
    %594 = vmatpush1.bf16.msra.mxu0 0
    %595 = vmatprep.subr.bf16.mxu0 0
    %596 = vmatpush1.bf16.msra.mxu0 0
    %597 = vmatprep.subr.bf16.mxu0 0
    %598 = vmatpush1.bf16.msra.mxu0 0
    %599 = vmatprep.subr.bf16.mxu0 0
    %600 = vmatpush1.bf16.msra.mxu0 0
    %601 = vmatprep.subr.bf16.mxu0 0
    %602 = vmatpush1.bf16.msra.mxu0 0
    %603 = vmatprep.mubr.bf16.mxu0 0
    %604 = vmatmul.mubr.bf16.gmra.mrb[0].mxu0 %v569
    %v605 = vpop.f32.mrb[0].mxu0
    %v606 = vadd.f32 %v275, %v605
    %v607 = vpop.f32.mrb[0].mxu0
    %v608 = vpop.f32.mrb[0].mxu0
    %v609 = vpop.f32.mrb[0].mxu0
    %610 = vdwg.mxu0
    %v611 = vadd.f32 %v258, %v606
    %v612 = vxor.u32 %v611, 2147483648
    %v613 = vmul.f32 %v612, 1.442695
    %v614 = vpow.pop %v613
    %v615 = vadd.f32 %v614, 1.0
    %v616 = vrcp.pop %v615
    %v617 = vmul.f32 1.0, %v616
    %619 = vrot.lane.b32.xlu0 %v606, 64
    %v620 = vpop.permute.xlu0 %619
    %v622 = vmul.f32 %v617, %v620
    %624 = vrot.lane.b32.xlu0 %v622, 64
    %v625 = vpop.permute.xlu0 %624
    %v627 = vadd.f32 %v258, %v625
    %v628 = vtanh.pop %v627
    %v629 = vsub.f32 1.0, %v617
    %631 = vrot.lane.b32.xlu0 %v628, 96
    %v632 = vpop.permute.xlu0 %631
    %v634 = vmul.f32 %v629, %v632
    %v635 = vmul.f32 %v617, %v563
    %v636 = vadd.f32 %v634, %v635
    %v637 = vpack.c.bf16 %v636, %v636
    %639 = vrot.lane.b32.xlu0 %v637, 96
    %v640 = vpop.permute.xlu0 %639
    %v642 = vsel %vm194, %v640, 0
    %644 = vmatprep.subr.bf16.mxu0 0
    %645 = vmatpush1.bf16.msra.mxu0 %v52
    %646 = vmatprep.subr.bf16.mxu0 0
    %647 = vmatpush1.bf16.msra.mxu0 %v53
    %648 = vmatprep.subr.bf16.mxu0 0
    %649 = vmatpush1.bf16.msra.mxu0 0
    %650 = vmatprep.subr.bf16.mxu0 0
    %651 = vmatpush1.bf16.msra.mxu0 0
    %652 = vmatprep.subr.bf16.mxu0 0
    %653 = vmatpush1.bf16.msra.mxu0 0
    %654 = vmatprep.subr.bf16.mxu0 0
    %655 = vmatpush1.bf16.msra.mxu0 0
    %656 = vmatprep.subr.bf16.mxu0 0
    %657 = vmatpush1.bf16.msra.mxu0 0
    %658 = vmatprep.subr.bf16.mxu0 0
    %659 = vmatpush1.bf16.msra.mxu0 0
    %660 = vmatprep.subr.bf16.mxu0 0
    %661 = vmatpush1.bf16.msra.mxu0 0
    %662 = vmatprep.subr.bf16.mxu0 0
    %663 = vmatpush1.bf16.msra.mxu0 0
    %664 = vmatprep.subr.bf16.mxu0 0
    %665 = vmatpush1.bf16.msra.mxu0 0
    %666 = vmatprep.subr.bf16.mxu0 0
    %667 = vmatpush1.bf16.msra.mxu0 0
    %668 = vmatprep.subr.bf16.mxu0 0
    %669 = vmatpush1.bf16.msra.mxu0 0
    %670 = vmatprep.subr.bf16.mxu0 0
    %671 = vmatpush1.bf16.msra.mxu0 0
    %672 = vmatprep.subr.bf16.mxu0 0
    %673 = vmatpush1.bf16.msra.mxu0 0
    %674 = vmatprep.subr.bf16.mxu0 0
    %675 = vmatpush1.bf16.msra.mxu0 0
    %676 = vmatprep.mubr.bf16.mxu0 0
    %677 = vmatmul.mubr.bf16.gmra.mrb[0].mxu0 %v642
    %v678 = vpop.f32.mrb[0].mxu0
    %v679 = vadd.f32 %v275, %v678
    %v680 = vpop.f32.mrb[0].mxu0
    %v681 = vpop.f32.mrb[0].mxu0
    %v682 = vpop.f32.mrb[0].mxu0
    %683 = vdwg.mxu0
    %v684 = vadd.f32 %v261, %v679
    %v685 = vxor.u32 %v684, 2147483648
    %v686 = vmul.f32 %v685, 1.442695
    %v687 = vpow.pop %v686
    %v688 = vadd.f32 %v687, 1.0
    %v689 = vrcp.pop %v688
    %v690 = vmul.f32 1.0, %v689
    %692 = vrot.lane.b32.xlu0 %v679, 64
    %v693 = vpop.permute.xlu0 %692
    %v695 = vmul.f32 %v690, %v693
    %697 = vrot.lane.b32.xlu0 %v695, 64
    %v698 = vpop.permute.xlu0 %697
    %v700 = vadd.f32 %v261, %v698
    %v701 = vtanh.pop %v700
    %v702 = vsub.f32 1.0, %v690
    %704 = vrot.lane.b32.xlu0 %v701, 96
    %v705 = vpop.permute.xlu0 %704
    %v707 = vmul.f32 %v702, %v705
    %v708 = vmul.f32 %v690, %v636
    %v709 = vadd.f32 %v707, %v708
    %v710 = vpack.c.bf16 %v709, %v709
    %712 = vrot.lane.b32.xlu0 %v710, 96
    %v713 = vpop.permute.xlu0 %712
    %v715 = vsel %vm194, %v713, 0
    %717 = vmatprep.subr.bf16.mxu0 0
    %718 = vmatpush1.bf16.msra.mxu0 %v52
    %719 = vmatprep.subr.bf16.mxu0 0
    %720 = vmatpush1.bf16.msra.mxu0 %v53
    %721 = vmatprep.subr.bf16.mxu0 0
    %722 = vmatpush1.bf16.msra.mxu0 0
    %723 = vmatprep.subr.bf16.mxu0 0
    %724 = vmatpush1.bf16.msra.mxu0 0
    %725 = vmatprep.subr.bf16.mxu0 0
    %726 = vmatpush1.bf16.msra.mxu0 0
    %727 = vmatprep.subr.bf16.mxu0 0
    %728 = vmatpush1.bf16.msra.mxu0 0
    %729 = vmatprep.subr.bf16.mxu0 0
    %730 = vmatpush1.bf16.msra.mxu0 0
    %731 = vmatprep.subr.bf16.mxu0 0
    %732 = vmatpush1.bf16.msra.mxu0 0
    %733 = vmatprep.subr.bf16.mxu0 0
    %734 = vmatpush1.bf16.msra.mxu0 0
    %735 = vmatprep.subr.bf16.mxu0 0
    %736 = vmatpush1.bf16.msra.mxu0 0
    %737 = vmatprep.subr.bf16.mxu0 0
    %738 = vmatpush1.bf16.msra.mxu0 0
    %739 = vmatprep.subr.bf16.mxu0 0
    %740 = vmatpush1.bf16.msra.mxu0 0
    %741 = vmatprep.subr.bf16.mxu0 0
    %742 = vmatpush1.bf16.msra.mxu0 0
    %743 = vmatprep.subr.bf16.mxu0 0
    %744 = vmatpush1.bf16.msra.mxu0 0
    %745 = vmatprep.subr.bf16.mxu0 0
    %746 = vmatpush1.bf16.msra.mxu0 0
    %747 = vmatprep.subr.bf16.mxu0 0
    %748 = vmatpush1.bf16.msra.mxu0 0
    %749 = vmatprep.mubr.bf16.mxu0 0
    %750 = vmatmul.mubr.bf16.gmra.mrb[0].mxu0 %v715
    %v751 = vpop.f32.mrb[0].mxu0
    %v752 = vadd.f32 %v275, %v751
    %v753 = vpop.f32.mrb[0].mxu0
    %v754 = vpop.f32.mrb[0].mxu0
    %v755 = vpop.f32.mrb[0].mxu0
    %756 = vdwg.mxu0
    %v757 = vadd.f32 %v266, %v752
    %v758 = vxor.u32 %v757, 2147483648
    %v759 = vmul.f32 %v758, 1.442695
    %v760 = vpow.pop %v759
    %v761 = vadd.f32 %v760, 1.0
    %v762 = vrcp.pop %v761
    %v763 = vmul.f32 1.0, %v762
    %765 = vrot.lane.b32.xlu0 %v752, 64
    %v766 = vpop.permute.xlu0 %765
    %v768 = vmul.f32 %v763, %v766
    %770 = vrot.lane.b32.xlu0 %v768, 64
    %v771 = vpop.permute.xlu0 %770
    %v773 = vadd.f32 %v266, %v771
    %v774 = vtanh.pop %v773
    %v775 = vsub.f32 1.0, %v763
    %777 = vrot.lane.b32.xlu0 %v774, 96
    %v778 = vpop.permute.xlu0 %777
    %v780 = vmul.f32 %v775, %v778
    %v781 = vmul.f32 %v763, %v709
    %v782 = vadd.f32 %v780, %v781
    %v783 = vpack.c.bf16 %v782, %v782
    %785 = vrot.lane.b32.xlu0 %v783, 96
    %v786 = vpop.permute.xlu0 %785
    %v788 = vsel %vm194, %v786, 0
    %790 = vmatprep.subr.bf16.mxu0 0
    %791 = vmatpush1.bf16.msra.mxu0 %v52
    %792 = vmatprep.subr.bf16.mxu0 0
    %793 = vmatpush1.bf16.msra.mxu0 %v53
    %794 = vmatprep.subr.bf16.mxu0 0
    %795 = vmatpush1.bf16.msra.mxu0 0
    %796 = vmatprep.subr.bf16.mxu0 0
    %797 = vmatpush1.bf16.msra.mxu0 0
    %798 = vmatprep.subr.bf16.mxu0 0
    %799 = vmatpush1.bf16.msra.mxu0 0
    %800 = vmatprep.subr.bf16.mxu0 0
    %801 = vmatpush1.bf16.msra.mxu0 0
    %802 = vmatprep.subr.bf16.mxu0 0
    %803 = vmatpush1.bf16.msra.mxu0 0
    %804 = vmatprep.subr.bf16.mxu0 0
    %805 = vmatpush1.bf16.msra.mxu0 0
    %806 = vmatprep.subr.bf16.mxu0 0
    %807 = vmatpush1.bf16.msra.mxu0 0
    %808 = vmatprep.subr.bf16.mxu0 0
    %809 = vmatpush1.bf16.msra.mxu0 0
    %810 = vmatprep.subr.bf16.mxu0 0
    %811 = vmatpush1.bf16.msra.mxu0 0
    %812 = vmatprep.subr.bf16.mxu0 0
    %813 = vmatpush1.bf16.msra.mxu0 0
    %814 = vmatprep.subr.bf16.mxu0 0
    %815 = vmatpush1.bf16.msra.mxu0 0
    %816 = vmatprep.subr.bf16.mxu0 0
    %817 = vmatpush1.bf16.msra.mxu0 0
    %818 = vmatprep.subr.bf16.mxu0 0
    %819 = vmatpush1.bf16.msra.mxu0 0
    %820 = vmatprep.subr.bf16.mxu0 0
    %821 = vmatpush1.bf16.msra.mxu0 0
    %822 = vmatprep.mubr.bf16.mxu0 0
    %823 = vmatmul.mubr.bf16.gmra.mrb[0].mxu0 %v788
    %v824 = vpop.f32.mrb[0].mxu0
    %v825 = vadd.f32 %v275, %v824
    %v826 = vpop.f32.mrb[0].mxu0
    %v827 = vpop.f32.mrb[0].mxu0
    %v828 = vpop.f32.mrb[0].mxu0
    %829 = vdwg.mxu0
    %v830 = vadd.f32 %v269, %v825
    %v831 = vxor.u32 %v830, 2147483648
    %v832 = vmul.f32 %v831, 1.442695
    %v833 = vpow.pop %v832
    %v834 = vadd.f32 %v833, 1.0
    %v835 = vrcp.pop %v834
    %v836 = vmul.f32 1.0, %v835
    %838 = vrot.lane.b32.xlu0 %v825, 64
    %v839 = vpop.permute.xlu0 %838
    %v841 = vmul.f32 %v836, %v839
    %843 = vrot.lane.b32.xlu0 %v841, 64
    %v844 = vpop.permute.xlu0 %843
    %v846 = vadd.f32 %v269, %v844
    %v847 = vtanh.pop %v846
    %v848 = vsub.f32 1.0, %v836
    %850 = vrot.lane.b32.xlu0 %v847, 96
    %v851 = vpop.permute.xlu0 %850
    %v853 = vmul.f32 %v848, %v851
    %v854 = vmul.f32 %v836, %v782
    %v855 = vadd.f32 %v853, %v854
    %v856 = vpack.c.bf16 %v417, %v344
    %v857 = vpack.c.bf16 %v563, %v490
    %v858 = vpack.c.bf16 %v709, %v636
    %v859 = vpack.c.bf16 %v855, %v782
    %v860 = vpack.c.bf16 %v855, %v855
    %v861 = vlaneseq
    %v862 = vshrl.u32 %v861, 7
    %v863 = vsub.s32 2, %v862
    %v864 = vrot.slane %v86, %v863
    %866 = vrot.lane.b32.xlu0 %v860, 96
    %v867 = vpop.permute.xlu0 %866
    %v869 = vsel %vm194, %v867, 0
    %871 = vmatprep.subr.bf16.mxu0 0
    %872 = vmatpush1.bf16.msra.mxu0 %v64
    %873 = vmatprep.subr.bf16.mxu0 0
    %874 = vmatpush1.bf16.msra.mxu0 %v65
    %875 = vmatprep.subr.bf16.mxu0 0
    %876 = vmatpush1.bf16.msra.mxu0 0
    %877 = vmatprep.subr.bf16.mxu0 0
    %878 = vmatpush1.bf16.msra.mxu0 0
    %879 = vmatprep.subr.bf16.mxu0 0
    %880 = vmatpush1.bf16.msra.mxu0 0
    %881 = vmatprep.subr.bf16.mxu0 0
    %882 = vmatpush1.bf16.msra.mxu0 0
    %883 = vmatprep.subr.bf16.mxu0 0
    %884 = vmatpush1.bf16.msra.mxu0 0
    %885 = vmatprep.subr.bf16.mxu0 0
    %886 = vmatpush1.bf16.msra.mxu0 0
    %887 = vmatprep.subr.bf16.mxu0 0
    %888 = vmatpush1.bf16.msra.mxu0 0
    %889 = vmatprep.subr.bf16.mxu0 0
    %890 = vmatpush1.bf16.msra.mxu0 0
    %891 = vmatprep.subr.bf16.mxu0 0
    %892 = vmatpush1.bf16.msra.mxu0 0
    %893 = vmatprep.subr.bf16.mxu0 0
    %894 = vmatpush1.bf16.msra.mxu0 0
    %895 = vmatprep.subr.bf16.mxu0 0
    %896 = vmatpush1.bf16.msra.mxu0 0
    %897 = vmatprep.subr.bf16.mxu0 0
    %898 = vmatpush1.bf16.msra.mxu0 0
    %899 = vmatprep.subr.bf16.mxu0 0
    %900 = vmatpush1.bf16.msra.mxu0 0
    %901 = vmatprep.subr.bf16.mxu0 0
    %902 = vmatpush1.bf16.msra.mxu0 0
    %903 = vmatprep.mubr.bf16.mxu0 0
    %904 = vmatmul.mubr.bf16.gmra.mrb[0].mxu0 %v869
    %v905 = vpop.f32.mrb[0].mxu0
    %v906 = vadd.f32 %v864, %v905
    %v907 = vpop.f32.mrb[0].mxu0
    %v908 = vpop.f32.mrb[0].mxu0
    %v909 = vpop.f32.mrb[0].mxu0
    %910 = vdwg.mxu0
    %915 = vrot.lane.b32.xlu0 %v856, 96
    %v916 = vpop.permute.xlu0 %915
    %917 = vrot.lane.b32.xlu0 %v857, 96
    %v918 = vpop.permute.xlu0 %917
    %919 = vrot.lane.b32.xlu0 %v858, 96
    %v920 = vpop.permute.xlu0 %919
    %921 = vrot.lane.b32.xlu0 %v859, 96
    %v922 = vpop.permute.xlu0 %921
    %v924 = vsel %vm194, %v916, 0
    %v927 = vsel %vm194, %v918, 0
    %v930 = vsel %vm194, %v920, 0
    %v933 = vsel %vm194, %v922, 0
    %935 = vmatprep.subr.bf16.mxu0 0
    %936 = vmatpush1.bf16.msra.mxu0 %v58
    %937 = vmatprep.subr.bf16.mxu0 0
    %938 = vmatpush1.bf16.msra.mxu0 %v59
    %939 = vmatprep.subr.bf16.mxu0 0
    %940 = vmatpush1.bf16.msra.mxu0 0
    %941 = vmatprep.subr.bf16.mxu0 0
    %942 = vmatpush1.bf16.msra.mxu0 0
    %943 = vmatprep.subr.bf16.mxu0 0
    %944 = vmatpush1.bf16.msra.mxu0 0
    %945 = vmatprep.subr.bf16.mxu0 0
    %946 = vmatpush1.bf16.msra.mxu0 0
    %947 = vmatprep.subr.bf16.mxu0 0
    %948 = vmatpush1.bf16.msra.mxu0 0
    %949 = vmatprep.subr.bf16.mxu0 0
    %950 = vmatpush1.bf16.msra.mxu0 0
    %951 = vmatprep.subr.bf16.mxu0 0
    %952 = vmatpush1.bf16.msra.mxu0 0
    %953 = vmatprep.subr.bf16.mxu0 0
    %954 = vmatpush1.bf16.msra.mxu0 0
    %955 = vmatprep.subr.bf16.mxu0 0
    %956 = vmatpush1.bf16.msra.mxu0 0
    %957 = vmatprep.subr.bf16.mxu0 0
    %958 = vmatpush1.bf16.msra.mxu0 0
    %959 = vmatprep.subr.bf16.mxu0 0
    %960 = vmatpush1.bf16.msra.mxu0 0
    %961 = vmatprep.subr.bf16.mxu0 0
    %962 = vmatpush1.bf16.msra.mxu0 0
    %963 = vmatprep.subr.bf16.mxu0 0
    %964 = vmatpush1.bf16.msra.mxu0 0
    %965 = vmatprep.subr.bf16.mxu0 0
    %966 = vmatpush1.bf16.msra.mxu0 0
    %967 = vmatprep.mubr.bf16.mxu0 0
    %968 = vmatmul.mubr.bf16.gmra.mrb[0].mxu0 %v924
    %v969 = vpop.f32.mrb[0].mxu0
    %v970 = vadd.f32 %v906, %v969
    %v971 = vpop.f32.mrb[0].mxu0
    %v972 = vpop.f32.mrb[0].mxu0
    %v973 = vadd.f32 %v906, %v972
    %v974 = vpop.f32.mrb[0].mxu0
    %975 = vmatprep.mubr.bf16.mxu0 0
    %976 = vmatmul.mubr.bf16.gmra.mrb[0].mxu0 %v927
    %v977 = vpop.f32.mrb[0].mxu0
    %v978 = vadd.f32 %v906, %v977
    %v979 = vpop.f32.mrb[0].mxu0
    %v980 = vpop.f32.mrb[0].mxu0
    %v981 = vadd.f32 %v906, %v980
    %v982 = vpop.f32.mrb[0].mxu0
    %983 = vmatprep.mubr.bf16.mxu0 0
    %984 = vmatmul.mubr.bf16.gmra.mrb[0].mxu0 %v930
    %v985 = vpop.f32.mrb[0].mxu0
    %v986 = vadd.f32 %v906, %v985
    %v987 = vpop.f32.mrb[0].mxu0
    %v988 = vpop.f32.mrb[0].mxu0
    %v989 = vadd.f32 %v906, %v988
    %v990 = vpop.f32.mrb[0].mxu0
    %991 = vmatprep.mubr.bf16.mxu0 0
    %992 = vmatmul.mubr.bf16.gmra.mrb[0].mxu0 %v933
    %v993 = vpop.f32.mrb[0].mxu0
    %v994 = vadd.f32 %v906, %v993
    %v995 = vpop.f32.mrb[0].mxu0
    %v996 = vpop.f32.mrb[0].mxu0
    %v997 = vadd.f32 %v906, %v996
    %v998 = vpop.f32.mrb[0].mxu0
    %999 = vdwg.mxu0
    %v1000 = vtanh.pop %v970
    %v1001 = vtanh.pop %v973
    %v1002 = vtanh.pop %v978
    %v1003 = vtanh.pop %v981
    %v1004 = vtanh.pop %v986
    %v1005 = vtanh.pop %v989
    %v1006 = vtanh.pop %v994
    %v1007 = vtanh.pop %v997
    %1008 = vmatprep.subr.mxu0 0.0
    %1009 = vmatpush1.msra.mxu0 %v70
    %1010 = vmatprep.subr.mxu0 0.0
    %1011 = vmatpush1.msra.mxu0 %v71
    %1012 = vmatprep.subr.mxu0 0.0
    %1013 = vmatpush1.msra.mxu0 %v72
    %1014 = vmatprep.subr.mxu0 0.0
    %1015 = vmatpush1.msra.mxu0 %v73
    %1016 = vmatprep.subr.mxu0 0.0
    %1017 = vmatpush1.msra.mxu0 %v74
    %1018 = vmatprep.subr.mxu0 0.0
    %1019 = vmatpush1.msra.mxu0 %v75
    %1020 = vmatprep.subr.mxu0 0.0
    %1021 = vmatpush1.msra.mxu0 %v76
    %1022 = vmatprep.subr.mxu0 0.0
    %1023 = vmatpush1.msra.mxu0 %v77
    %1024 = vmatprep.subr.mxu0 0.0
    %1025 = vmatpush1.msra.mxu0 %v78
    %1026 = vmatprep.subr.mxu0 0.0
    %1027 = vmatpush1.msra.mxu0 %v79
    %1028 = vmatprep.subr.mxu0 0.0
    %1029 = vmatpush1.msra.mxu0 %v80
    %1030 = vmatprep.subr.mxu0 0.0
    %1031 = vmatpush1.msra.mxu0 %v81
    %1032 = vmatprep.subr.mxu0 0.0
    %1033 = vmatpush1.msra.mxu0 %v82
    %1034 = vmatprep.subr.mxu0 0.0
    %1035 = vmatpush1.msra.mxu0 %v83
    %1036 = vmatprep.subr.mxu0 0.0
    %1037 = vmatpush1.msra.mxu0 %v84
    %1038 = vmatprep.subr.mxu0 0.0
    %1039 = vmatpush1.msra.mxu0 %v85
    %1040 = vmatprep.subr.mxu0 0.0
    %1041 = vmatpush1.msra.mxu0 0.0
    %1042 = vmatprep.subr.mxu0 0.0
    %1043 = vmatpush1.msra.mxu0 0.0
    %1044 = vmatprep.subr.mxu0 0.0
    %1045 = vmatpush1.msra.mxu0 0.0
    %1046 = vmatprep.subr.mxu0 0.0
    %1047 = vmatpush1.msra.mxu0 0.0
    %1048 = vmatprep.subr.mxu0 0.0
    %1049 = vmatpush1.msra.mxu0 0.0
    %1050 = vmatprep.subr.mxu0 0.0
    %1051 = vmatpush1.msra.mxu0 0.0
    %1052 = vmatprep.subr.mxu0 0.0
    %1053 = vmatpush1.msra.mxu0 0.0
    %1054 = vmatprep.subr.mxu0 0.0
    %1055 = vmatpush1.msra.mxu0 0.0
    %1056 = vmatprep.subr.mxu0 0.0
    %1057 = vmatpush1.msra.mxu0 0.0
    %1058 = vmatprep.subr.mxu0 0.0
    %1059 = vmatpush1.msra.mxu0 0.0
    %1060 = vmatprep.subr.mxu0 0.0
    %1061 = vmatpush1.msra.mxu0 0.0
    %1062 = vmatprep.subr.mxu0 0.0
    %1063 = vmatpush1.msra.mxu0 0.0
    %1064 = vmatprep.subr.mxu0 0.0
    %1065 = vmatpush1.msra.mxu0 0.0
    %1066 = vmatprep.subr.mxu0 0.0
    %1067 = vmatpush1.msra.mxu0 0.0
    %1068 = vmatprep.subr.mxu0 0.0
    %1069 = vmatpush1.msra.mxu0 0.0
    %1070 = vmatprep.subr.mxu0 0.0
    %1071 = vmatpush1.msra.mxu0 0.0
    %1072 = vmatprep.mubr.f32.mxu0 0.0
    %1073 = vmatmul.mubr.f32.gmra.mrb[0].mxu0 %v1000
    %v1074 = vpop.f32.mrb[0].mxu0
    %v1075 = vadd.f32 0.0, %v1074
    %v1076 = vpop.f32.mrb[0].mxu0
    %1077 = vmatprep.mubr.f32.mxu0 0.0
    %1078 = vmatmul.mubr.f32.gmra.mrb[0].mxu0 %v1001
    %v1079 = vpop.f32.mrb[0].mxu0
    %v1080 = vadd.f32 0.0, %v1079
    %v1081 = vpop.f32.mrb[0].mxu0
    %1082 = vmatprep.mubr.f32.mxu0 0.0
    %1083 = vmatmul.mubr.f32.gmra.mrb[0].mxu0 %v1002
    %v1084 = vpop.f32.mrb[0].mxu0
    %v1085 = vadd.f32 0.0, %v1084
    %v1086 = vpop.f32.mrb[0].mxu0
    %1087 = vmatprep.mubr.f32.mxu0 0.0
    %1088 = vmatmul.mubr.f32.gmra.mrb[0].mxu0 %v1003
    %v1089 = vpop.f32.mrb[0].mxu0
    %v1090 = vadd.f32 0.0, %v1089
    %v1091 = vpop.f32.mrb[0].mxu0
    %1092 = vmatprep.mubr.f32.mxu0 0.0
    %1093 = vmatmul.mubr.f32.gmra.mrb[0].mxu0 %v1004
    %v1094 = vpop.f32.mrb[0].mxu0
    %v1095 = vadd.f32 0.0, %v1094
    %v1096 = vpop.f32.mrb[0].mxu0
    %1097 = vmatprep.mubr.f32.mxu0 0.0
    %1098 = vmatmul.mubr.f32.gmra.mrb[0].mxu0 %v1005
    %v1099 = vpop.f32.mrb[0].mxu0
    %v1100 = vadd.f32 0.0, %v1099
    %v1101 = vpop.f32.mrb[0].mxu0
    %1102 = vmatprep.mubr.f32.mxu0 0.0
    %1103 = vmatmul.mubr.f32.gmra.mrb[0].mxu0 %v1006
    %v1104 = vpop.f32.mrb[0].mxu0
    %v1105 = vadd.f32 0.0, %v1104
    %v1106 = vpop.f32.mrb[0].mxu0
    %1107 = vmatprep.mubr.f32.mxu0 0.0
    %1108 = vmatmul.mubr.f32.gmra.mrb[0].mxu0 %v1007
    %v1109 = vpop.f32.mrb[0].mxu0
    %v1110 = vadd.f32 0.0, %v1109
    %v1111 = vpop.f32.mrb[0].mxu0
    %1112 = vdwg.mxu0
    %1114 = vrot.lane.b32.xlu0 %v1080, 1
    %v1115 = vpop.permute.xlu0 %1114
    %1118 = vrot.lane.b32.xlu0 %v1085, 2
    %v1119 = vpop.permute.xlu0 %1118
    %1122 = vrot.lane.b32.xlu0 %v1090, 3
    %v1123 = vpop.permute.xlu0 %1122
    %1126 = vrot.lane.b32.xlu0 %v1095, 4
    %v1127 = vpop.permute.xlu0 %1126
    %1130 = vrot.lane.b32.xlu0 %v1100, 5
    %v1131 = vpop.permute.xlu0 %1130
    %1134 = vrot.lane.b32.xlu0 %v1105, 6
    %v1135 = vpop.permute.xlu0 %1134
    %1138 = vrot.lane.b32.xlu0 %v1110, 7
    %v1139 = vpop.permute.xlu0 %1138
    %vm1141 = vcmask 7168
    %v1142 = vsel %vm1141, %v1075, %v1115
    %vm1143 = vcmask 15360
    %v1144 = vsel %vm1143, %v1142, %v1119
    %vm1145 = vcmask 23552
    %v1146 = vsel %vm1145, %v1144, %v1123
    %vm1147 = vcmask 31744
    %v1148 = vsel %vm1147, %v1146, %v1127
    %vm1149 = vcmask 39936
    %v1150 = vsel %vm1149, %v1148, %v1131
    %vm1151 = vcmask 48128
    %v1152 = vsel %vm1151, %v1150, %v1135
    %vm1153 = vcmask 56320
    %v1154 = vsel %vm1153, %v1152, %v1139
    %vm1155 = vcmask 64512
    %v1156 = vsel %vm1155, %v1154, -inf
    %1157 = vmax.xlane.f32.xlu0 %v1156
    %v1158 = vpop.xlane.xlu0 %1157
    %v1159 = vsub.f32 %v1154, %v1158
    %v1160 = vmul.f32 %v1159, 1.442695
    %v1161 = vpow.pop %v1160
    %v1162 = vsel %vm1155, %v1161, 0.0
    %1163 = vadd.xlane.f32.xlu0 %v1162
    %v1164 = vpop.xlane.xlu0 %1163
    %v1165 = vrcp.pop %v1164
    %v1166 = vmul.f32 %v1161, %v1165
    %1168 = vset.pattern.permute.xlu0 0
    %1169 = vperm.xlu0 %1168, %v1166
    %v1170 = vpop.permute.xlu0 %1169
    %v1172 = vmul.f32 %v1170, %v344
    %v1173 = vadd.f32 %v1172, 0.0
    %1174 = vset.pattern.permute.xlu0 1
    %1175 = vperm.xlu0 %1174, %v1166
    %v1176 = vpop.permute.xlu0 %1175
    %v1178 = vmul.f32 %v1176, %v417
    %v1179 = vadd.f32 %v1173, %v1178
    %1180 = vset.pattern.permute.xlu0 2
    %1181 = vperm.xlu0 %1180, %v1166
    %v1182 = vpop.permute.xlu0 %1181
    %v1184 = vmul.f32 %v1182, %v490
    %v1185 = vadd.f32 %v1179, %v1184
    %1186 = vset.pattern.permute.xlu0 3
    %1187 = vperm.xlu0 %1186, %v1166
    %v1188 = vpop.permute.xlu0 %1187
    %v1190 = vmul.f32 %v1188, %v563
    %v1191 = vadd.f32 %v1185, %v1190
    %1192 = vset.pattern.permute.xlu0 4
    %1193 = vperm.xlu0 %1192, %v1166
    %v1194 = vpop.permute.xlu0 %1193
    %v1196 = vmul.f32 %v1194, %v636
    %v1197 = vadd.f32 %v1191, %v1196
    %1198 = vset.pattern.permute.xlu0 5
    %1199 = vperm.xlu0 %1198, %v1166
    %v1200 = vpop.permute.xlu0 %1199
    %v1202 = vmul.f32 %v1200, %v709
    %v1203 = vadd.f32 %v1197, %v1202
    %1204 = vset.pattern.permute.xlu0 6
    %1205 = vperm.xlu0 %1204, %v1166
    %v1206 = vpop.permute.xlu0 %1205
    %v1208 = vmul.f32 %v1206, %v782
    %v1209 = vadd.f32 %v1203, %v1208
    %1210 = vset.pattern.permute.xlu0 7
    %1211 = vperm.xlu0 %1210, %v1166
    %v1212 = vpop.permute.xlu0 %1211
    %v1214 = vmul.f32 %v1212, %v855
    %v1215 = vadd.f32 %v1209, %v1214
    %v1216 = vlaneseq
    %v1217 = vshrl.u32 %v1216, 7
    %v1218 = vsub.s32 3, %v1217
    %v1219 = vrot.slane %v86, %v1218
    %1221 = vrot.lane.b32.xlu0 %v1215, 96
    %v1222 = vpop.permute.xlu0 %1221
    %v1223 = vsel %vm194, %v1222, 0
    %1225 = vmatprep.subr.mxu0 0.0
    %1226 = vmatpush1.msra.mxu0 %v66
    %1227 = vmatprep.subr.mxu0 0.0
    %1228 = vmatpush1.msra.mxu0 %v67
    %1229 = vmatprep.subr.mxu0 0.0
    %1230 = vmatpush1.msra.mxu0 %v68
    %1231 = vmatprep.subr.mxu0 0.0
    %1232 = vmatpush1.msra.mxu0 %v69
    %1233 = vmatprep.subr.mxu0 0.0
    %1234 = vmatpush1.msra.mxu0 0.0
    %1235 = vmatprep.subr.mxu0 0.0
    %1236 = vmatpush1.msra.mxu0 0.0
    %1237 = vmatprep.subr.mxu0 0.0
    %1238 = vmatpush1.msra.mxu0 0.0
    %1239 = vmatprep.subr.mxu0 0.0
    %1240 = vmatpush1.msra.mxu0 0.0
    %1241 = vmatprep.subr.mxu0 0.0
    %1242 = vmatpush1.msra.mxu0 0.0
    %1243 = vmatprep.subr.mxu0 0.0
    %1244 = vmatpush1.msra.mxu0 0.0
    %1245 = vmatprep.subr.mxu0 0.0
    %1246 = vmatpush1.msra.mxu0 0.0
    %1247 = vmatprep.subr.mxu0 0.0
    %1248 = vmatpush1.msra.mxu0 0.0
    %1249 = vmatprep.subr.mxu0 0.0
    %1250 = vmatpush1.msra.mxu0 0.0
    %1251 = vmatprep.subr.mxu0 0.0
    %1252 = vmatpush1.msra.mxu0 0.0
    %1253 = vmatprep.subr.mxu0 0.0
    %1254 = vmatpush1.msra.mxu0 0.0
    %1255 = vmatprep.subr.mxu0 0.0
    %1256 = vmatpush1.msra.mxu0 0.0
    %1257 = vmatprep.subr.mxu0 0.0
    %1258 = vmatpush1.msra.mxu0 0.0
    %1259 = vmatprep.subr.mxu0 0.0
    %1260 = vmatpush1.msra.mxu0 0.0
    %1261 = vmatprep.subr.mxu0 0.0
    %1262 = vmatpush1.msra.mxu0 0.0
    %1263 = vmatprep.subr.mxu0 0.0
    %1264 = vmatpush1.msra.mxu0 0.0
    %1265 = vmatprep.subr.mxu0 0.0
    %1266 = vmatpush1.msra.mxu0 0.0
    %1267 = vmatprep.subr.mxu0 0.0
    %1268 = vmatpush1.msra.mxu0 0.0
    %1269 = vmatprep.subr.mxu0 0.0
    %1270 = vmatpush1.msra.mxu0 0.0
    %1271 = vmatprep.subr.mxu0 0.0
    %1272 = vmatpush1.msra.mxu0 0.0
    %1273 = vmatprep.subr.mxu0 0.0
    %1274 = vmatpush1.msra.mxu0 0.0
    %1275 = vmatprep.subr.mxu0 0.0
    %1276 = vmatpush1.msra.mxu0 0.0
    %1277 = vmatprep.subr.mxu0 0.0
    %1278 = vmatpush1.msra.mxu0 0.0
    %1279 = vmatprep.subr.mxu0 0.0
    %1280 = vmatpush1.msra.mxu0 0.0
    %1281 = vmatprep.subr.mxu0 0.0
    %1282 = vmatpush1.msra.mxu0 0.0
    %1283 = vmatprep.subr.mxu0 0.0
    %1284 = vmatpush1.msra.mxu0 0.0
    %1285 = vmatprep.subr.mxu0 0.0
    %1286 = vmatpush1.msra.mxu0 0.0
    %1287 = vmatprep.subr.mxu0 0.0
    %1288 = vmatpush1.msra.mxu0 0.0
    %1289 = vmatprep.mubr.f32.mxu0 0.0
    %1290 = vmatmul.mubr.f32.gmra.mrb[0].mxu0 %v1223
    %v1291 = vpop.f32.mrb[0].mxu0
    %v1292 = vadd.f32 %v1219, %v1291
    %v1293 = vpop.f32.mrb[0].mxu0
    %1294 = vdwg.mxu0
    %1295 = vst [vmem:[%s3] sm:$0xff] %v1292
    // Predicated region
    $region22: #{rnn_forward.1} parent=1 // pred_check
      _
    $region23: #{rnn_forward.1} parent=1 // pred_check_branch
      %1297 = sbr.rel (0) target = $region25
    $region24: #{rnn_forward.1} parent=1 // pred_region
      _
    $region25: #{rnn_forward.1} parent=1 // pred_fallthru
      _
    // Predicated region
    $region26: #{rnn_forward.1} parent=1 // pred_check
      _
    $region27: #{rnn_forward.1} parent=1 // pred_check_branch
      %1299 = sbr.rel (0) target = $region29
    $region28: #{rnn_forward.1} parent=1 // pred_region
      _
    $region29: #{rnn_forward.1} parent=1 // pred_fallthru
      _
    %1300 = vsyncpa [#allocation3], 1
    %1301 = vsyncpa [#allocation4], 1

</llo_original>
